<compile_context>
chip_gen: v7x
topology: tpu7x:2x2x1
jax: 0.10.0
libtpu: 0.0.40
codegen_flags: <defaults>
</compile_context>

<pallas_src>
import jax
import jax.numpy as jnp
from jax import lax
from jax.experimental import pallas as pl
from jax.experimental.pallas import tpu as pltpu

H = 5           # LSTM hidden size (module spec: nn.LSTM(15, 5))
HP = 8          # hidden size padded to one full sublane group
CONV_OUT = 15   # Conv1d(no_tracks, 15, 1)
CP = 16         # conv output rows padded to 2 sublane groups

_GATE_PERM = (0, 1, 3, 2)   # PyTorch gate order (i, f, g, o) -> kernel (i, f, o, g)


def bichrom_kernel(x_ref, base_ref, conv_w_ref, conv_b_ref, wih_ref, whh_ref,
                   bg_ref, head_ref, out_ref, g_scratch):
    # x_ref:      (1, C, L*BN)   chromatin tile, lanes are (t-major, batch-minor)
    # base_ref:   (1, BN)        base_model(seq_input) output
    # conv_w_ref: (CP, C)        Conv1d(k=1) weight, rows zero-padded 15 -> 16
    # conv_b_ref: (CP, 1)
    # wih_ref:    (4*HP, CP)     stacked+padded LSTM input weights (i, f, o, g)
    # whh_ref:    (4*HP, HP)     stacked+padded LSTM hidden weights
    # bg_ref:     (4*HP, 1)      b_ih + b_hh, stacked+padded
    # head_ref:   SMEM (11,)     [linc_w[0..4], linc_b, lin1_w, lin1_b,
    #                             lin2_w_seq, lin2_w_chrom, lin2_b]
    # out_ref:    (1, BN)
    # g_scratch:  (L, 4*HP, BN)  per-timestep input-gate preactivations (VMEM)
    L = g_scratch.shape[0]
    BN = out_ref.shape[1]

    # ---- Phase 1 (independent of the recurrence): fused over ALL timesteps.
    # One conv matmul and one input->gate matmul over L*BN lanes, then park the
    # per-timestep slabs in VMEM scratch via static 128-aligned lane slices.
    x = x_ref[0]                                                     # (C, L*BN)
    z = jnp.dot(conv_w_ref[...], x,
                preferred_element_type=jnp.float32) + conv_b_ref[...]
    z = jnp.maximum(z, 0.0)                                          # (CP, L*BN)
    g_all = jnp.dot(wih_ref[...], z,
                    preferred_element_type=jnp.float32) + bg_ref[...]  # (4*HP, L*BN)
    for t in range(L):
        g_scratch[t] = g_all[:, t * BN:(t + 1) * BN]

    # ---- Phase 2: serial LSTM recurrence.  fori_loop bounds live ranges (no
    # vreg blow-up at large BN); the hidden projection is a VPU broadcast-MAC.
    whh = whh_ref[...]                                               # (4*HP, HP)

    def step(t, carry):
        h, c = carry
        rec = whh[:, 0:1] * h[0:1, :]
        for k in range(1, H):
            rec = rec + whh[:, k:k + 1] * h[k:k + 1, :]
        gates = g_scratch[t] + rec                                   # (4*HP, BN)
        sig = jax.nn.sigmoid(gates[0:3 * HP, :])                     # i | f | o
        g_g = jnp.tanh(gates[3 * HP:4 * HP, :])
        c_new = sig[HP:2 * HP, :] * c + sig[0:HP, :] * g_g
        h_new = sig[2 * HP:3 * HP, :] * jnp.tanh(c_new)
        # Padded rows (>= H inside each gate block) stay exactly 0 in h and c.
        return h_new, c_new

    h0 = jnp.zeros((HP, BN), jnp.float32)
    c0 = jnp.zeros((HP, BN), jnp.float32)
    h, _ = lax.fori_loop(0, L, step, (h0, c0), unroll=(L <= 8))

    # ---- Heads (all scalars come from the consolidated SMEM operand).
    # chromatin head: Linear(5->1) + tanh, as a scalar-broadcast MAC over H units.
    xc = head_ref[0] * h[0:1, :]
    for k in range(1, H):
        xc = xc + head_ref[k] * h[k:k + 1, :]
    xc = jnp.tanh(xc + head_ref[5])                                  # (1, BN)
    # sequence head: Linear(1->1) + tanh on the base_model output.
    xs = jnp.tanh(head_ref[6] * base_ref[...] + head_ref[7])         # (1, BN)
    # concat + Linear(2->1) + sigmoid; the concat is folded into two scalars.
    out_ref[...] = jax.nn.sigmoid(head_ref[8] * xs + head_ref[9] * xc
                                  + head_ref[10])


def init_params(key, n_tracks, seq_feat_dim, hidden=H):
    ks = jax.random.split(key, 14)

    def u(k, shape, scale=0.3):
        return jax.random.uniform(k, shape, jnp.float32, -1.0, 1.0) * scale

    return dict(
        conv_w=u(ks[0], (CONV_OUT, n_tracks)),   # Conv1d weight (out, in, 1) squeezed
        conv_b=u(ks[1], (CONV_OUT,)),
        w_ih=u(ks[2], (4 * hidden, CONV_OUT)),   # LSTM weight_ih_l0, gate order i,f,g,o
        w_hh=u(ks[3], (4 * hidden, hidden)),     # LSTM weight_hh_l0
        b_ih=u(ks[4], (4 * hidden,)),
        b_hh=u(ks[5], (4 * hidden,)),
        linc_w=u(ks[6], (1, hidden)),            # bichrom_chrom.linear
        linc_b=u(ks[7], (1,)),
        lin1_w=u(ks[8], (1, 1)),                 # bichrom.linear
        lin1_b=u(ks[9], (1,)),
        lin2_w=u(ks[10], (1, 2)),                # bichrom.linear2
        lin2_b=u(ks[11], (1,)),
        base_w=u(ks[12], (seq_feat_dim, 1)),     # synthetic base_model dense
        base_b=u(ks[13], (1,)),
    )


def _pack_gates(w, width):
    """(4*H, width) PyTorch gate-stacked -> (4*HP, width): reorder to (i,f,o,g)
    and zero-pad each gate block from H to HP sublane rows."""
    w4 = w.reshape(4, H, width)[jnp.array(_GATE_PERM)]
    w4 = jnp.pad(w4, ((0, 0), (0, HP - H), (0, 0)))
    return w4.reshape(4 * HP, width)


def _round_up(a, b):
    return -(-a // b) * b


def _pick_batch_tile(N, L, C, batch_tile, vmem_budget_bytes):
    """128-aligned batch tile sized against a VMEM budget (f32 bytes/column):
    double-buffered chromatin block + g_scratch + phase-1 intermediates
    (compiler spill) + recurrence working set."""
    per_col = 4 * (2 * L * C + 4 * HP * L + (CP + 4 * HP) * L + 16 * HP)
    budget_bn = max(128, (vmem_budget_bytes // per_col) // 128 * 128)
    bn = min(_round_up(max(batch_tile, 128), 128), budget_bn)
    n128 = _round_up(N, 128)
    if n128 <= bn:
        # One tile would cover everything: keep >= 2 grid programs when there
        # is enough work so both v7x TensorCores get a share.
        bn = _round_up(-(-N // 2), 128) if n128 > 128 else 128
    n_pad = _round_up(N, bn)
    return bn, n_pad


def bichrom_forward(params, seq_input, chromatin_input, *, batch_tile=1024,
                    vmem_budget_bytes=24 * 1024 * 1024):
    N = seq_input.shape[0]
    _, C, L = chromatin_input.shape
    f32 = jnp.float32

    # Synthetic base_model: one dense layer on the flattened sequence input.
    # TODO(synk): the real base_model is an external module given to __init__;
    # its 'dense_2' forward-hook activation is captured but never used in the
    # forward pass, so it is omitted here.
    seq_flat = seq_input.reshape(N, -1).astype(f32)
    base_out = seq_flat @ params['base_w'] + params['base_b']          # (N, 1)

    bn, n_pad = _pick_batch_tile(N, L, C, batch_tile, vmem_budget_bytes)
    num_tiles = n_pad // bn

    # ---- chromatin: (N, C, L) -> (num_tiles, C, L*bn), lanes t-major/batch-minor.
    x = jnp.transpose(chromatin_input.astype(f32), (1, 2, 0))          # (C, L, N)
    base_t = base_out.astype(f32).T                                    # (1, N)
    if n_pad != N:
        x = jnp.pad(x, ((0, 0), (0, 0), (0, n_pad - N)))
        base_t = jnp.pad(base_t, ((0, 0), (0, n_pad - N)))
    x = (x.reshape(C, L, num_tiles, bn)
          .transpose(2, 0, 1, 3)
          .reshape(num_tiles, C, L * bn))

    # ---- weight plumbing: reorder/fuse the 4 gates (i,f,o,g), pad each gate
    # block to HP rows, pad conv rows to CP; tiny head scalars -> one SMEM op.
    conv_w = jnp.pad(params['conv_w'].astype(f32),
                     ((0, CP - CONV_OUT), (0, 0)))                     # (16, C)
    conv_b = jnp.pad(params['conv_b'].reshape(CONV_OUT, 1).astype(f32),
                     ((0, CP - CONV_OUT), (0, 0)))                     # (16, 1)
    w_ih_p = jnp.pad(_pack_gates(params['w_ih'].astype(f32), CONV_OUT),
                     ((0, 0), (0, CP - CONV_OUT)))                     # (32, 16)
    w_hh_p = jnp.pad(_pack_gates(params['w_hh'].astype(f32), H),
                     ((0, 0), (0, HP - H)))                            # (32, 8)
    bg_p = _pack_gates((params['b_ih'] + params['b_hh'])
                       .reshape(4 * H, 1).astype(f32), 1)              # (32, 1)
    head = jnp.concatenate([
        params['linc_w'].reshape(-1), params['linc_b'].reshape(-1),
        params['lin1_w'].reshape(-1), params['lin1_b'].reshape(-1),
        params['lin2_w'].reshape(-1), params['lin2_b'].reshape(-1),
    ]).astype(f32)                                                     # (11,)

    vmem_weights = (conv_w, conv_b, w_ih_p, w_hh_p, bg_p)
    vmem_specs = [pl.BlockSpec(w.shape, lambda i: (0, 0)) for w in vmem_weights]

    out = pl.pallas_call(
        bichrom_kernel,
        out_shape=jax.ShapeDtypeStruct((1, n_pad), jnp.float32),
        grid=(num_tiles,),
        in_specs=[pl.BlockSpec((1, C, L * bn), lambda i: (i, 0, 0)),
                  pl.BlockSpec((1, bn), lambda i: (0, i))]
                 + vmem_specs
                 + [pl.BlockSpec(memory_space=pltpu.MemorySpace.SMEM)],
        out_specs=pl.BlockSpec((1, bn), lambda i: (0, i)),
        scratch_shapes=[pltpu.VMEM((L, 4 * HP, bn), jnp.float32)],
        compiler_params=pltpu.CompilerParams(
            dimension_semantics=("parallel",),
            vmem_limit_bytes=int(min(vmem_budget_bytes + (8 << 20), 64 << 20))),
    )(x, base_t, *vmem_weights, head)

    return out[:, :N].T                                                # (N, 1)


def bichrom_reference(params, seq_input, chromatin_input):
    """Pure-JAX reference mirroring the PyTorch forward exactly."""
    N = seq_input.shape[0]
    seq_flat = seq_input.reshape(N, -1)
    result = seq_flat @ params['base_w'] + params['base_b']
    xs = jnp.tanh(result @ params['lin1_w'].T + params['lin1_b'])

    x = chromatin_input                                               # (N, C, L)
    z = jnp.einsum('ncl,oc->nol', x, params['conv_w']) + params['conv_b'][None, :, None]
    z = jnp.maximum(z, 0.0)
    z = jnp.transpose(z, (0, 2, 1))                                   # (N, L, 15)
    h = jnp.zeros((N, H), jnp.float32)
    c = jnp.zeros((N, H), jnp.float32)
    b = params['b_ih'] + params['b_hh']
    for t in range(z.shape[1]):
        gates = z[:, t, :] @ params['w_ih'].T + h @ params['w_hh'].T + b
        i_g = jax.nn.sigmoid(gates[:, 0:H])
        f_g = jax.nn.sigmoid(gates[:, H:2 * H])
        g_g = jnp.tanh(gates[:, 2 * H:3 * H])
        o_g = jax.nn.sigmoid(gates[:, 3 * H:4 * H])
        c = f_g * c + i_g * g_g
        h = o_g * jnp.tanh(c)
    xc = jnp.tanh(h @ params['linc_w'].T + params['linc_b'])
    xsc = jnp.concatenate([xs, xc], axis=1)
    return jax.nn.sigmoid(xsc @ params['lin2_w'].T + params['lin2_b'])


if __name__ == "__main__":
    key = jax.random.PRNGKey(0)
    kp, kseq, kchrom = jax.random.split(key, 3)

    N = 2                       # batch
    TRACKS, L = 4, 8            # chromatin: (N, tracks, length)
    SEQ_C, SEQ_L = 4, 16        # sequence input: (N, 4, 16)

    params = init_params(kp, TRACKS, SEQ_C * SEQ_L)
    seq_input = jax.random.normal(kseq, (N, SEQ_C, SEQ_L), jnp.float32)
    chromatin_input = jax.random.normal(kchrom, (N, TRACKS, L), jnp.float32)

    out = jax.block_until_ready(bichrom_forward(params, seq_input, chromatin_input))
    ref = bichrom_reference(params, seq_input, chromatin_input)
    assert out.shape == (N, 1), out.shape
    assert jnp.allclose(out, ref, atol=1e-5, rtol=1e-5), (out, ref)

    # Multi-tile paths: auto-split into >=2 programs, and an explicit small
    # tile with a ragged (padded) last block.
    N2 = 260
    kseq2, kchrom2 = jax.random.split(jax.random.PRNGKey(1), 2)
    seq2 = jax.random.normal(kseq2, (N2, SEQ_C, SEQ_L), jnp.float32)
    chrom2 = jax.random.normal(kchrom2, (N2, TRACKS, L), jnp.float32)
    ref2 = bichrom_reference(params, seq2, chrom2)

    out2 = jax.block_until_ready(bichrom_forward(params, seq2, chrom2))
    assert out2.shape == (N2, 1), out2.shape
    assert jnp.allclose(out2, ref2, atol=1e-5, rtol=1e-5)

    out3 = jax.block_until_ready(
        bichrom_forward(params, seq2, chrom2, batch_tile=128))
    assert jnp.allclose(out3, ref2, atol=1e-5, rtol=1e-5)

    print("KERNEL_OK")
</pallas_src>

<mosaic_0001>
module attributes {stable_mosaic.version = 11 : i64} {
  func.func @bichrom_kernel(%arg0: i32, %arg1: memref<1x4x1024xf32, #tpu.memory_space<vmem>>, %arg2: memref<1x128xf32, #tpu.memory_space<vmem>>, %arg3: memref<16x4xf32, #tpu.memory_space<vmem>>, %arg4: memref<16x1xf32, #tpu.memory_space<vmem>>, %arg5: memref<32x16xf32, #tpu.memory_space<vmem>>, %arg6: memref<32x8xf32, #tpu.memory_space<vmem>>, %arg7: memref<32x1xf32, #tpu.memory_space<vmem>>, %arg8: memref<11xf32, #tpu.memory_space<smem>>, %arg9: memref<1x128xf32, #tpu.memory_space<vmem>>, %arg10: memref<8x32x128xf32, #tpu.memory_space<vmem>>) attributes {dimension_semantics = [#tpu.dimension_semantics<parallel>], iteration_bounds = array<i64: 1>, scalar_prefetch = 0 : i64, scratch_operands = 1 : i64, tpu.core_type = #tpu.core_type<tc>, window_params = [{transform_indices = @transform_0, window_bounds = array<i64: 1, 4, 1024>}, {transform_indices = @transform_1, window_bounds = array<i64: 1, 128>}, {pipeline_mode = #tpu.pipeline_mode<synchronous>, transform_indices = @transform_2, window_bounds = array<i64: 16, 4>}, {pipeline_mode = #tpu.pipeline_mode<synchronous>, transform_indices = @transform_3, window_bounds = array<i64: 16, 1>}, {pipeline_mode = #tpu.pipeline_mode<synchronous>, transform_indices = @transform_4, window_bounds = array<i64: 32, 16>}, {pipeline_mode = #tpu.pipeline_mode<synchronous>, transform_indices = @transform_5, window_bounds = array<i64: 32, 8>}, {pipeline_mode = #tpu.pipeline_mode<synchronous>, transform_indices = @transform_6, window_bounds = array<i64: 32, 1>}, {transform_indices = @transform_7, window_bounds = array<i64: 11>}, {transform_indices = @transform_8, window_bounds = array<i64: 1, 128>}]} {
    %c0 = arith.constant 0 : index
    %c0_0 = arith.constant 0 : index
    %c0_1 = arith.constant 0 : index
    %0 = vector.load %arg1[%c0, %c0_0, %c0_1] : memref<1x4x1024xf32, #tpu.memory_space<vmem>>, vector<1x4x1024xf32>
    %1 = vector.shape_cast %0 : vector<1x4x1024xf32> to vector<4x1024xf32>
    %c0_2 = arith.constant 0 : index
    %c0_3 = arith.constant 0 : index
    %2 = vector.load %arg3[%c0_2, %c0_3] : memref<16x4xf32, #tpu.memory_space<vmem>>, vector<16x4xf32>
    %cst = arith.constant dense<0.000000e+00> : vector<16x1024xf32>
    %3 = tpu.matmul %2, %1, %cst {dimension_numbers = #tpu.dot_dimension_numbers<[1], [0], [0], [1], [0, 0, 1, 1], [], []>} : vector<16x4xf32>, vector<4x1024xf32>, vector<16x1024xf32> -> vector<16x1024xf32>
    %c0_4 = arith.constant 0 : index
    %c0_5 = arith.constant 0 : index
    %4 = vector.load %arg4[%c0_4, %c0_5] : memref<16x1xf32, #tpu.memory_space<vmem>>, vector<16x1xf32>
    %5 = vector.broadcast %4 : vector<16x1xf32> to vector<16x1024xf32>
    %6 = arith.addf %3, %5 : vector<16x1024xf32>
    %cst_6 = arith.constant 0.000000e+00 : f32
    %7 = vector.broadcast %cst_6 : f32 to vector<16x1024xf32>
    %8 = arith.maximumf %6, %7 : vector<16x1024xf32>
    %c0_7 = arith.constant 0 : index
    %c0_8 = arith.constant 0 : index
    %9 = vector.load %arg5[%c0_7, %c0_8] : memref<32x16xf32, #tpu.memory_space<vmem>>, vector<32x16xf32>
    %cst_9 = arith.constant dense<0.000000e+00> : vector<32x1024xf32>
    %10 = tpu.matmul %9, %8, %cst_9 {dimension_numbers = #tpu.dot_dimension_numbers<[1], [0], [0], [1], [0, 0, 1, 1], [], []>} : vector<32x16xf32>, vector<16x1024xf32>, vector<32x1024xf32> -> vector<32x1024xf32>
    %c0_10 = arith.constant 0 : index
    %c0_11 = arith.constant 0 : index
    %11 = vector.load %arg7[%c0_10, %c0_11] : memref<32x1xf32, #tpu.memory_space<vmem>>, vector<32x1xf32>
    %12 = vector.broadcast %11 : vector<32x1xf32> to vector<32x1024xf32>
    %13 = arith.addf %10, %12 : vector<32x1024xf32>
    %14 = vector.extract_strided_slice %13 {offsets = [0, 0], sizes = [32, 128], strides = [1, 1]} : vector<32x1024xf32> to vector<32x128xf32>
    %c0_12 = arith.constant 0 : index
    %c0_13 = arith.constant 0 : index
    %c0_14 = arith.constant 0 : index
    %15 = vector.load %arg10[%c0_12, %c0_13, %c0_14] : memref<8x32x128xf32, #tpu.memory_space<vmem>>, vector<1x32x128xf32>
    %16 = vector.shape_cast %15 : vector<1x32x128xf32> to vector<32x128xf32>
    %17 = vector.shape_cast %14 : vector<32x128xf32> to vector<1x32x128xf32>
    tpu.vector_store %arg10[%c0_12, %c0_13, %c0_14], %17 {strides = array<i32>} : memref<8x32x128xf32, #tpu.memory_space<vmem>>, vector<1x32x128xf32>,
    %18 = vector.extract_strided_slice %13 {offsets = [0, 128], sizes = [32, 128], strides = [1, 1]} : vector<32x1024xf32> to vector<32x128xf32>
    %c1 = arith.constant 1 : index
    %c0_15 = arith.constant 0 : index
    %c0_16 = arith.constant 0 : index
    %19 = vector.load %arg10[%c1, %c0_15, %c0_16] : memref<8x32x128xf32, #tpu.memory_space<vmem>>, vector<1x32x128xf32>
    %20 = vector.shape_cast %19 : vector<1x32x128xf32> to vector<32x128xf32>
    %21 = vector.shape_cast %18 : vector<32x128xf32> to vector<1x32x128xf32>
    tpu.vector_store %arg10[%c1, %c0_15, %c0_16], %21 {strides = array<i32>} : memref<8x32x128xf32, #tpu.memory_space<vmem>>, vector<1x32x128xf32>,
    %22 = vector.extract_strided_slice %13 {offsets = [0, 256], sizes = [32, 128], strides = [1, 1]} : vector<32x1024xf32> to vector<32x128xf32>
    %c2 = arith.constant 2 : index
    %c0_17 = arith.constant 0 : index
    %c0_18 = arith.constant 0 : index
    %23 = vector.load %arg10[%c2, %c0_17, %c0_18] : memref<8x32x128xf32, #tpu.memory_space<vmem>>, vector<1x32x128xf32>
    %24 = vector.shape_cast %23 : vector<1x32x128xf32> to vector<32x128xf32>
    %25 = vector.shape_cast %22 : vector<32x128xf32> to vector<1x32x128xf32>
    tpu.vector_store %arg10[%c2, %c0_17, %c0_18], %25 {strides = array<i32>} : memref<8x32x128xf32, #tpu.memory_space<vmem>>, vector<1x32x128xf32>,
    %26 = vector.extract_strided_slice %13 {offsets = [0, 384], sizes = [32, 128], strides = [1, 1]} : vector<32x1024xf32> to vector<32x128xf32>
    %c3 = arith.constant 3 : index
    %c0_19 = arith.constant 0 : index
    %c0_20 = arith.constant 0 : index
    %27 = vector.load %arg10[%c3, %c0_19, %c0_20] : memref<8x32x128xf32, #tpu.memory_space<vmem>>, vector<1x32x128xf32>
    %28 = vector.shape_cast %27 : vector<1x32x128xf32> to vector<32x128xf32>
    %29 = vector.shape_cast %26 : vector<32x128xf32> to vector<1x32x128xf32>
    tpu.vector_store %arg10[%c3, %c0_19, %c0_20], %29 {strides = array<i32>} : memref<8x32x128xf32, #tpu.memory_space<vmem>>, vector<1x32x128xf32>,
    %30 = vector.extract_strided_slice %13 {offsets = [0, 512], sizes = [32, 128], strides = [1, 1]} : vector<32x1024xf32> to vector<32x128xf32>
    %c4 = arith.constant 4 : index
    %c0_21 = arith.constant 0 : index
    %c0_22 = arith.constant 0 : index
    %31 = vector.load %arg10[%c4, %c0_21, %c0_22] : memref<8x32x128xf32, #tpu.memory_space<vmem>>, vector<1x32x128xf32>
    %32 = vector.shape_cast %31 : vector<1x32x128xf32> to vector<32x128xf32>
    %33 = vector.shape_cast %30 : vector<32x128xf32> to vector<1x32x128xf32>
    tpu.vector_store %arg10[%c4, %c0_21, %c0_22], %33 {strides = array<i32>} : memref<8x32x128xf32, #tpu.memory_space<vmem>>, vector<1x32x128xf32>,
    %34 = vector.extract_strided_slice %13 {offsets = [0, 640], sizes = [32, 128], strides = [1, 1]} : vector<32x1024xf32> to vector<32x128xf32>
    %c5 = arith.constant 5 : index
    %c0_23 = arith.constant 0 : index
    %c0_24 = arith.constant 0 : index
    %35 = vector.load %arg10[%c5, %c0_23, %c0_24] : memref<8x32x128xf32, #tpu.memory_space<vmem>>, vector<1x32x128xf32>
    %36 = vector.shape_cast %35 : vector<1x32x128xf32> to vector<32x128xf32>
    %37 = vector.shape_cast %34 : vector<32x128xf32> to vector<1x32x128xf32>
    tpu.vector_store %arg10[%c5, %c0_23, %c0_24], %37 {strides = array<i32>} : memref<8x32x128xf32, #tpu.memory_space<vmem>>, vector<1x32x128xf32>,
    %38 = vector.extract_strided_slice %13 {offsets = [0, 768], sizes = [32, 128], strides = [1, 1]} : vector<32x1024xf32> to vector<32x128xf32>
    %c6 = arith.constant 6 : index
    %c0_25 = arith.constant 0 : index
    %c0_26 = arith.constant 0 : index
    %39 = vector.load %arg10[%c6, %c0_25, %c0_26] : memref<8x32x128xf32, #tpu.memory_space<vmem>>, vector<1x32x128xf32>
    %40 = vector.shape_cast %39 : vector<1x32x128xf32> to vector<32x128xf32>
    %41 = vector.shape_cast %38 : vector<32x128xf32> to vector<1x32x128xf32>
    tpu.vector_store %arg10[%c6, %c0_25, %c0_26], %41 {strides = array<i32>} : memref<8x32x128xf32, #tpu.memory_space<vmem>>, vector<1x32x128xf32>,
    %42 = vector.extract_strided_slice %13 {offsets = [0, 896], sizes = [32, 128], strides = [1, 1]} : vector<32x1024xf32> to vector<32x128xf32>
    %c7 = arith.constant 7 : index
    %c0_27 = arith.constant 0 : index
    %c0_28 = arith.constant 0 : index
    %43 = vector.load %arg10[%c7, %c0_27, %c0_28] : memref<8x32x128xf32, #tpu.memory_space<vmem>>, vector<1x32x128xf32>
    %44 = vector.shape_cast %43 : vector<1x32x128xf32> to vector<32x128xf32>
    %45 = vector.shape_cast %42 : vector<32x128xf32> to vector<1x32x128xf32>
    tpu.vector_store %arg10[%c7, %c0_27, %c0_28], %45 {strides = array<i32>} : memref<8x32x128xf32, #tpu.memory_space<vmem>>, vector<1x32x128xf32>,
    %c0_29 = arith.constant 0 : index
    %c0_30 = arith.constant 0 : index
    %46 = vector.load %arg6[%c0_29, %c0_30] : memref<32x8xf32, #tpu.memory_space<vmem>>, vector<32x8xf32>
    %cst_31 = arith.constant 0.000000e+00 : f32
    %47 = vector.broadcast %cst_31 : f32 to vector<8x128xf32>
    %cst_32 = arith.constant 0.000000e+00 : f32
    %48 = vector.broadcast %cst_32 : f32 to vector<8x128xf32>
    %c0_i32 = arith.constant 0 : i32
    %49 = vector.extract_strided_slice %46 {offsets = [0, 0], sizes = [32, 1], strides = [1, 1]} : vector<32x8xf32> to vector<32x1xf32>
    %50 = vector.extract_strided_slice %47 {offsets = [0, 0], sizes = [1, 128], strides = [1, 1]} : vector<8x128xf32> to vector<1x128xf32>
    %51 = vector.broadcast %49 : vector<32x1xf32> to vector<32x128xf32>
    %52 = vector.broadcast %50 : vector<1x128xf32> to vector<32x128xf32>
    %53 = arith.mulf %51, %52 : vector<32x128xf32>
    %54 = vector.extract_strided_slice %46 {offsets = [0, 1], sizes = [32, 1], strides = [1, 1]} : vector<32x8xf32> to vector<32x1xf32>
    %55 = vector.extract_strided_slice %47 {offsets = [1, 0], sizes = [1, 128], strides = [1, 1]} : vector<8x128xf32> to vector<1x128xf32>
    %56 = vector.broadcast %54 : vector<32x1xf32> to vector<32x128xf32>
    %57 = vector.broadcast %55 : vector<1x128xf32> to vector<32x128xf32>
    %58 = arith.mulf %56, %57 : vector<32x128xf32>
    %59 = arith.addf %53, %58 : vector<32x128xf32>
    %60 = vector.extract_strided_slice %46 {offsets = [0, 2], sizes = [32, 1], strides = [1, 1]} : vector<32x8xf32> to vector<32x1xf32>
    %61 = vector.extract_strided_slice %47 {offsets = [2, 0], sizes = [1, 128], strides = [1, 1]} : vector<8x128xf32> to vector<1x128xf32>
    %62 = vector.broadcast %60 : vector<32x1xf32> to vector<32x128xf32>
    %63 = vector.broadcast %61 : vector<1x128xf32> to vector<32x128xf32>
    %64 = arith.mulf %62, %63 : vector<32x128xf32>
    %65 = arith.addf %59, %64 : vector<32x128xf32>
    %66 = vector.extract_strided_slice %46 {offsets = [0, 3], sizes = [32, 1], strides = [1, 1]} : vector<32x8xf32> to vector<32x1xf32>
    %67 = vector.extract_strided_slice %47 {offsets = [3, 0], sizes = [1, 128], strides = [1, 1]} : vector<8x128xf32> to vector<1x128xf32>
    %68 = vector.broadcast %66 : vector<32x1xf32> to vector<32x128xf32>
    %69 = vector.broadcast %67 : vector<1x128xf32> to vector<32x128xf32>
    %70 = arith.mulf %68, %69 : vector<32x128xf32>
    %71 = arith.addf %65, %70 : vector<32x128xf32>
    %72 = vector.extract_strided_slice %46 {offsets = [0, 4], sizes = [32, 1], strides = [1, 1]} : vector<32x8xf32> to vector<32x1xf32>
    %73 = vector.extract_strided_slice %47 {offsets = [4, 0], sizes = [1, 128], strides = [1, 1]} : vector<8x128xf32> to vector<1x128xf32>
    %74 = vector.broadcast %72 : vector<32x1xf32> to vector<32x128xf32>
    %75 = vector.broadcast %73 : vector<1x128xf32> to vector<32x128xf32>
    %76 = arith.mulf %74, %75 : vector<32x128xf32>
    %77 = arith.addf %71, %76 : vector<32x128xf32>
    %78 = arith.index_cast %c0_i32 : i32 to index
    %c0_33 = arith.constant 0 : index
    %c0_34 = arith.constant 0 : index
    %79 = vector.load %arg10[%78, %c0_33, %c0_34] : memref<8x32x128xf32, #tpu.memory_space<vmem>>, vector<1x32x128xf32>
    %80 = vector.shape_cast %79 : vector<1x32x128xf32> to vector<32x128xf32>
    %81 = arith.addf %80, %77 : vector<32x128xf32>
    %82 = vector.extract_strided_slice %81 {offsets = [0, 0], sizes = [24, 128], strides = [1, 1]} : vector<32x128xf32> to vector<24x128xf32>
    %83 = arith.negf %82 : vector<24x128xf32>
    %84 = math.exp %83 : vector<24x128xf32>
    %cst_35 = arith.constant 1.000000e+00 : f32
    %85 = vector.broadcast %cst_35 : f32 to vector<24x128xf32>
    %86 = arith.addf %85, %84 : vector<24x128xf32>
    %87 = arith.divf %85, %86 : vector<24x128xf32>
    %88 = vector.extract_strided_slice %81 {offsets = [24, 0], sizes = [8, 128], strides = [1, 1]} : vector<32x128xf32> to vector<8x128xf32>
    %89 = math.tanh %88 : vector<8x128xf32>
    %90 = vector.extract_strided_slice %87 {offsets = [8, 0], sizes = [8, 128], strides = [1, 1]} : vector<24x128xf32> to vector<8x128xf32>
    %91 = arith.mulf %90, %48 : vector<8x128xf32>
    %92 = vector.extract_strided_slice %87 {offsets = [0, 0], sizes = [8, 128], strides = [1, 1]} : vector<24x128xf32> to vector<8x128xf32>
    %93 = arith.mulf %92, %89 : vector<8x128xf32>
    %94 = arith.addf %91, %93 : vector<8x128xf32>
    %95 = vector.extract_strided_slice %87 {offsets = [16, 0], sizes = [8, 128], strides = [1, 1]} : vector<24x128xf32> to vector<8x128xf32>
    %96 = math.tanh %94 : vector<8x128xf32>
    %97 = arith.mulf %95, %96 : vector<8x128xf32>
    %c1_i32 = arith.constant 1 : i32
    %98 = vector.extract_strided_slice %46 {offsets = [0, 0], sizes = [32, 1], strides = [1, 1]} : vector<32x8xf32> to vector<32x1xf32>
    %99 = vector.extract_strided_slice %97 {offsets = [0, 0], sizes = [1, 128], strides = [1, 1]} : vector<8x128xf32> to vector<1x128xf32>
    %100 = vector.broadcast %98 : vector<32x1xf32> to vector<32x128xf32>
    %101 = vector.broadcast %99 : vector<1x128xf32> to vector<32x128xf32>
    %102 = arith.mulf %100, %101 : vector<32x128xf32>
    %103 = vector.extract_strided_slice %46 {offsets = [0, 1], sizes = [32, 1], strides = [1, 1]} : vector<32x8xf32> to vector<32x1xf32>
    %104 = vector.extract_strided_slice %97 {offsets = [1, 0], sizes = [1, 128], strides = [1, 1]} : vector<8x128xf32> to vector<1x128xf32>
    %105 = vector.broadcast %103 : vector<32x1xf32> to vector<32x128xf32>
    %106 = vector.broadcast %104 : vector<1x128xf32> to vector<32x128xf32>
    %107 = arith.mulf %105, %106 : vector<32x128xf32>
    %108 = arith.addf %102, %107 : vector<32x128xf32>
    %109 = vector.extract_strided_slice %46 {offsets = [0, 2], sizes = [32, 1], strides = [1, 1]} : vector<32x8xf32> to vector<32x1xf32>
    %110 = vector.extract_strided_slice %97 {offsets = [2, 0], sizes = [1, 128], strides = [1, 1]} : vector<8x128xf32> to vector<1x128xf32>
    %111 = vector.broadcast %109 : vector<32x1xf32> to vector<32x128xf32>
    %112 = vector.broadcast %110 : vector<1x128xf32> to vector<32x128xf32>
    %113 = arith.mulf %111, %112 : vector<32x128xf32>
    %114 = arith.addf %108, %113 : vector<32x128xf32>
    %115 = vector.extract_strided_slice %46 {offsets = [0, 3], sizes = [32, 1], strides = [1, 1]} : vector<32x8xf32> to vector<32x1xf32>
    %116 = vector.extract_strided_slice %97 {offsets = [3, 0], sizes = [1, 128], strides = [1, 1]} : vector<8x128xf32> to vector<1x128xf32>
    %117 = vector.broadcast %115 : vector<32x1xf32> to vector<32x128xf32>
    %118 = vector.broadcast %116 : vector<1x128xf32> to vector<32x128xf32>
    %119 = arith.mulf %117, %118 : vector<32x128xf32>
    %120 = arith.addf %114, %119 : vector<32x128xf32>
    %121 = vector.extract_strided_slice %46 {offsets = [0, 4], sizes = [32, 1], strides = [1, 1]} : vector<32x8xf32> to vector<32x1xf32>
    %122 = vector.extract_strided_slice %97 {offsets = [4, 0], sizes = [1, 128], strides = [1, 1]} : vector<8x128xf32> to vector<1x128xf32>
    %123 = vector.broadcast %121 : vector<32x1xf32> to vector<32x128xf32>
    %124 = vector.broadcast %122 : vector<1x128xf32> to vector<32x128xf32>
    %125 = arith.mulf %123, %124 : vector<32x128xf32>
    %126 = arith.addf %120, %125 : vector<32x128xf32>
    %127 = arith.index_cast %c1_i32 : i32 to index
    %c0_36 = arith.constant 0 : index
    %c0_37 = arith.constant 0 : index
    %128 = vector.load %arg10[%127, %c0_36, %c0_37] : memref<8x32x128xf32, #tpu.memory_space<vmem>>, vector<1x32x128xf32>
    %129 = vector.shape_cast %128 : vector<1x32x128xf32> to vector<32x128xf32>
    %130 = arith.addf %129, %126 : vector<32x128xf32>
    %131 = vector.extract_strided_slice %130 {offsets = [0, 0], sizes = [24, 128], strides = [1, 1]} : vector<32x128xf32> to vector<24x128xf32>
    %132 = arith.negf %131 : vector<24x128xf32>
    %133 = math.exp %132 : vector<24x128xf32>
    %cst_38 = arith.constant 1.000000e+00 : f32
    %134 = vector.broadcast %cst_38 : f32 to vector<24x128xf32>
    %135 = arith.addf %134, %133 : vector<24x128xf32>
    %136 = arith.divf %134, %135 : vector<24x128xf32>
    %137 = vector.extract_strided_slice %130 {offsets = [24, 0], sizes = [8, 128], strides = [1, 1]} : vector<32x128xf32> to vector<8x128xf32>
    %138 = math.tanh %137 : vector<8x128xf32>
    %139 = vector.extract_strided_slice %136 {offsets = [8, 0], sizes = [8, 128], strides = [1, 1]} : vector<24x128xf32> to vector<8x128xf32>
    %140 = arith.mulf %139, %94 : vector<8x128xf32>
    %141 = vector.extract_strided_slice %136 {offsets = [0, 0], sizes = [8, 128], strides = [1, 1]} : vector<24x128xf32> to vector<8x128xf32>
    %142 = arith.mulf %141, %138 : vector<8x128xf32>
    %143 = arith.addf %140, %142 : vector<8x128xf32>
    %144 = vector.extract_strided_slice %136 {offsets = [16, 0], sizes = [8, 128], strides = [1, 1]} : vector<24x128xf32> to vector<8x128xf32>
    %145 = math.tanh %143 : vector<8x128xf32>
    %146 = arith.mulf %144, %145 : vector<8x128xf32>
    %c2_i32 = arith.constant 2 : i32
    %147 = vector.extract_strided_slice %46 {offsets = [0, 0], sizes = [32, 1], strides = [1, 1]} : vector<32x8xf32> to vector<32x1xf32>
    %148 = vector.extract_strided_slice %146 {offsets = [0, 0], sizes = [1, 128], strides = [1, 1]} : vector<8x128xf32> to vector<1x128xf32>
    %149 = vector.broadcast %147 : vector<32x1xf32> to vector<32x128xf32>
    %150 = vector.broadcast %148 : vector<1x128xf32> to vector<32x128xf32>
    %151 = arith.mulf %149, %150 : vector<32x128xf32>
    %152 = vector.extract_strided_slice %46 {offsets = [0, 1], sizes = [32, 1], strides = [1, 1]} : vector<32x8xf32> to vector<32x1xf32>
    %153 = vector.extract_strided_slice %146 {offsets = [1, 0], sizes = [1, 128], strides = [1, 1]} : vector<8x128xf32> to vector<1x128xf32>
    %154 = vector.broadcast %152 : vector<32x1xf32> to vector<32x128xf32>
    %155 = vector.broadcast %153 : vector<1x128xf32> to vector<32x128xf32>
    %156 = arith.mulf %154, %155 : vector<32x128xf32>
    %157 = arith.addf %151, %156 : vector<32x128xf32>
    %158 = vector.extract_strided_slice %46 {offsets = [0, 2], sizes = [32, 1], strides = [1, 1]} : vector<32x8xf32> to vector<32x1xf32>
    %159 = vector.extract_strided_slice %146 {offsets = [2, 0], sizes = [1, 128], strides = [1, 1]} : vector<8x128xf32> to vector<1x128xf32>
    %160 = vector.broadcast %158 : vector<32x1xf32> to vector<32x128xf32>
    %161 = vector.broadcast %159 : vector<1x128xf32> to vector<32x128xf32>
    %162 = arith.mulf %160, %161 : vector<32x128xf32>
    %163 = arith.addf %157, %162 : vector<32x128xf32>
    %164 = vector.extract_strided_slice %46 {offsets = [0, 3], sizes = [32, 1], strides = [1, 1]} : vector<32x8xf32> to vector<32x1xf32>
    %165 = vector.extract_strided_slice %146 {offsets = [3, 0], sizes = [1, 128], strides = [1, 1]} : vector<8x128xf32> to vector<1x128xf32>
    %166 = vector.broadcast %164 : vector<32x1xf32> to vector<32x128xf32>
    %167 = vector.broadcast %165 : vector<1x128xf32> to vector<32x128xf32>
    %168 = arith.mulf %166, %167 : vector<32x128xf32>
    %169 = arith.addf %163, %168 : vector<32x128xf32>
    %170 = vector.extract_strided_slice %46 {offsets = [0, 4], sizes = [32, 1], strides = [1, 1]} : vector<32x8xf32> to vector<32x1xf32>
    %171 = vector.extract_strided_slice %146 {offsets = [4, 0], sizes = [1, 128], strides = [1, 1]} : vector<8x128xf32> to vector<1x128xf32>
    %172 = vector.broadcast %170 : vector<32x1xf32> to vector<32x128xf32>
    %173 = vector.broadcast %171 : vector<1x128xf32> to vector<32x128xf32>
    %174 = arith.mulf %172, %173 : vector<32x128xf32>
    %175 = arith.addf %169, %174 : vector<32x128xf32>
    %176 = arith.index_cast %c2_i32 : i32 to index
    %c0_39 = arith.constant 0 : index
    %c0_40 = arith.constant 0 : index
    %177 = vector.load %arg10[%176, %c0_39, %c0_40] : memref<8x32x128xf32, #tpu.memory_space<vmem>>, vector<1x32x128xf32>
    %178 = vector.shape_cast %177 : vector<1x32x128xf32> to vector<32x128xf32>
    %179 = arith.addf %178, %175 : vector<32x128xf32>
    %180 = vector.extract_strided_slice %179 {offsets = [0, 0], sizes = [24, 128], strides = [1, 1]} : vector<32x128xf32> to vector<24x128xf32>
    %181 = arith.negf %180 : vector<24x128xf32>
    %182 = math.exp %181 : vector<24x128xf32>
    %cst_41 = arith.constant 1.000000e+00 : f32
    %183 = vector.broadcast %cst_41 : f32 to vector<24x128xf32>
    %184 = arith.addf %183, %182 : vector<24x128xf32>
    %185 = arith.divf %183, %184 : vector<24x128xf32>
    %186 = vector.extract_strided_slice %179 {offsets = [24, 0], sizes = [8, 128], strides = [1, 1]} : vector<32x128xf32> to vector<8x128xf32>
    %187 = math.tanh %186 : vector<8x128xf32>
    %188 = vector.extract_strided_slice %185 {offsets = [8, 0], sizes = [8, 128], strides = [1, 1]} : vector<24x128xf32> to vector<8x128xf32>
    %189 = arith.mulf %188, %143 : vector<8x128xf32>
    %190 = vector.extract_strided_slice %185 {offsets = [0, 0], sizes = [8, 128], strides = [1, 1]} : vector<24x128xf32> to vector<8x128xf32>
    %191 = arith.mulf %190, %187 : vector<8x128xf32>
    %192 = arith.addf %189, %191 : vector<8x128xf32>
    %193 = vector.extract_strided_slice %185 {offsets = [16, 0], sizes = [8, 128], strides = [1, 1]} : vector<24x128xf32> to vector<8x128xf32>
    %194 = math.tanh %192 : vector<8x128xf32>
    %195 = arith.mulf %193, %194 : vector<8x128xf32>
    %c3_i32 = arith.constant 3 : i32
    %196 = vector.extract_strided_slice %46 {offsets = [0, 0], sizes = [32, 1], strides = [1, 1]} : vector<32x8xf32> to vector<32x1xf32>
    %197 = vector.extract_strided_slice %195 {offsets = [0, 0], sizes = [1, 128], strides = [1, 1]} : vector<8x128xf32> to vector<1x128xf32>
    %198 = vector.broadcast %196 : vector<32x1xf32> to vector<32x128xf32>
    %199 = vector.broadcast %197 : vector<1x128xf32> to vector<32x128xf32>
    %200 = arith.mulf %198, %199 : vector<32x128xf32>
    %201 = vector.extract_strided_slice %46 {offsets = [0, 1], sizes = [32, 1], strides = [1, 1]} : vector<32x8xf32> to vector<32x1xf32>
    %202 = vector.extract_strided_slice %195 {offsets = [1, 0], sizes = [1, 128], strides = [1, 1]} : vector<8x128xf32> to vector<1x128xf32>
    %203 = vector.broadcast %201 : vector<32x1xf32> to vector<32x128xf32>
    %204 = vector.broadcast %202 : vector<1x128xf32> to vector<32x128xf32>
    %205 = arith.mulf %203, %204 : vector<32x128xf32>
    %206 = arith.addf %200, %205 : vector<32x128xf32>
    %207 = vector.extract_strided_slice %46 {offsets = [0, 2], sizes = [32, 1], strides = [1, 1]} : vector<32x8xf32> to vector<32x1xf32>
    %208 = vector.extract_strided_slice %195 {offsets = [2, 0], sizes = [1, 128], strides = [1, 1]} : vector<8x128xf32> to vector<1x128xf32>
    %209 = vector.broadcast %207 : vector<32x1xf32> to vector<32x128xf32>
    %210 = vector.broadcast %208 : vector<1x128xf32> to vector<32x128xf32>
    %211 = arith.mulf %209, %210 : vector<32x128xf32>
    %212 = arith.addf %206, %211 : vector<32x128xf32>
    %213 = vector.extract_strided_slice %46 {offsets = [0, 3], sizes = [32, 1], strides = [1, 1]} : vector<32x8xf32> to vector<32x1xf32>
    %214 = vector.extract_strided_slice %195 {offsets = [3, 0], sizes = [1, 128], strides = [1, 1]} : vector<8x128xf32> to vector<1x128xf32>
    %215 = vector.broadcast %213 : vector<32x1xf32> to vector<32x128xf32>
    %216 = vector.broadcast %214 : vector<1x128xf32> to vector<32x128xf32>
    %217 = arith.mulf %215, %216 : vector<32x128xf32>
    %218 = arith.addf %212, %217 : vector<32x128xf32>
    %219 = vector.extract_strided_slice %46 {offsets = [0, 4], sizes = [32, 1], strides = [1, 1]} : vector<32x8xf32> to vector<32x1xf32>
    %220 = vector.extract_strided_slice %195 {offsets = [4, 0], sizes = [1, 128], strides = [1, 1]} : vector<8x128xf32> to vector<1x128xf32>
    %221 = vector.broadcast %219 : vector<32x1xf32> to vector<32x128xf32>
    %222 = vector.broadcast %220 : vector<1x128xf32> to vector<32x128xf32>
    %223 = arith.mulf %221, %222 : vector<32x128xf32>
    %224 = arith.addf %218, %223 : vector<32x128xf32>
    %225 = arith.index_cast %c3_i32 : i32 to index
    %c0_42 = arith.constant 0 : index
    %c0_43 = arith.constant 0 : index
    %226 = vector.load %arg10[%225, %c0_42, %c0_43] : memref<8x32x128xf32, #tpu.memory_space<vmem>>, vector<1x32x128xf32>
    %227 = vector.shape_cast %226 : vector<1x32x128xf32> to vector<32x128xf32>
    %228 = arith.addf %227, %224 : vector<32x128xf32>
    %229 = vector.extract_strided_slice %228 {offsets = [0, 0], sizes = [24, 128], strides = [1, 1]} : vector<32x128xf32> to vector<24x128xf32>
    %230 = arith.negf %229 : vector<24x128xf32>
    %231 = math.exp %230 : vector<24x128xf32>
    %cst_44 = arith.constant 1.000000e+00 : f32
    %232 = vector.broadcast %cst_44 : f32 to vector<24x128xf32>
    %233 = arith.addf %232, %231 : vector<24x128xf32>
    %234 = arith.divf %232, %233 : vector<24x128xf32>
    %235 = vector.extract_strided_slice %228 {offsets = [24, 0], sizes = [8, 128], strides = [1, 1]} : vector<32x128xf32> to vector<8x128xf32>
    %236 = math.tanh %235 : vector<8x128xf32>
    %237 = vector.extract_strided_slice %234 {offsets = [8, 0], sizes = [8, 128], strides = [1, 1]} : vector<24x128xf32> to vector<8x128xf32>
    %238 = arith.mulf %237, %192 : vector<8x128xf32>
    %239 = vector.extract_strided_slice %234 {offsets = [0, 0], sizes = [8, 128], strides = [1, 1]} : vector<24x128xf32> to vector<8x128xf32>
    %240 = arith.mulf %239, %236 : vector<8x128xf32>
    %241 = arith.addf %238, %240 : vector<8x128xf32>
    %242 = vector.extract_strided_slice %234 {offsets = [16, 0], sizes = [8, 128], strides = [1, 1]} : vector<24x128xf32> to vector<8x128xf32>
    %243 = math.tanh %241 : vector<8x128xf32>
    %244 = arith.mulf %242, %243 : vector<8x128xf32>
    %c4_i32 = arith.constant 4 : i32
    %245 = vector.extract_strided_slice %46 {offsets = [0, 0], sizes = [32, 1], strides = [1, 1]} : vector<32x8xf32> to vector<32x1xf32>
    %246 = vector.extract_strided_slice %244 {offsets = [0, 0], sizes = [1, 128], strides = [1, 1]} : vector<8x128xf32> to vector<1x128xf32>
    %247 = vector.broadcast %245 : vector<32x1xf32> to vector<32x128xf32>
    %248 = vector.broadcast %246 : vector<1x128xf32> to vector<32x128xf32>
    %249 = arith.mulf %247, %248 : vector<32x128xf32>
    %250 = vector.extract_strided_slice %46 {offsets = [0, 1], sizes = [32, 1], strides = [1, 1]} : vector<32x8xf32> to vector<32x1xf32>
    %251 = vector.extract_strided_slice %244 {offsets = [1, 0], sizes = [1, 128], strides = [1, 1]} : vector<8x128xf32> to vector<1x128xf32>
    %252 = vector.broadcast %250 : vector<32x1xf32> to vector<32x128xf32>
    %253 = vector.broadcast %251 : vector<1x128xf32> to vector<32x128xf32>
    %254 = arith.mulf %252, %253 : vector<32x128xf32>
    %255 = arith.addf %249, %254 : vector<32x128xf32>
    %256 = vector.extract_strided_slice %46 {offsets = [0, 2], sizes = [32, 1], strides = [1, 1]} : vector<32x8xf32> to vector<32x1xf32>
    %257 = vector.extract_strided_slice %244 {offsets = [2, 0], sizes = [1, 128], strides = [1, 1]} : vector<8x128xf32> to vector<1x128xf32>
    %258 = vector.broadcast %256 : vector<32x1xf32> to vector<32x128xf32>
    %259 = vector.broadcast %257 : vector<1x128xf32> to vector<32x128xf32>
    %260 = arith.mulf %258, %259 : vector<32x128xf32>
    %261 = arith.addf %255, %260 : vector<32x128xf32>
    %262 = vector.extract_strided_slice %46 {offsets = [0, 3], sizes = [32, 1], strides = [1, 1]} : vector<32x8xf32> to vector<32x1xf32>
    %263 = vector.extract_strided_slice %244 {offsets = [3, 0], sizes = [1, 128], strides = [1, 1]} : vector<8x128xf32> to vector<1x128xf32>
    %264 = vector.broadcast %262 : vector<32x1xf32> to vector<32x128xf32>
    %265 = vector.broadcast %263 : vector<1x128xf32> to vector<32x128xf32>
    %266 = arith.mulf %264, %265 : vector<32x128xf32>
    %267 = arith.addf %261, %266 : vector<32x128xf32>
    %268 = vector.extract_strided_slice %46 {offsets = [0, 4], sizes = [32, 1], strides = [1, 1]} : vector<32x8xf32> to vector<32x1xf32>
    %269 = vector.extract_strided_slice %244 {offsets = [4, 0], sizes = [1, 128], strides = [1, 1]} : vector<8x128xf32> to vector<1x128xf32>
    %270 = vector.broadcast %268 : vector<32x1xf32> to vector<32x128xf32>
    %271 = vector.broadcast %269 : vector<1x128xf32> to vector<32x128xf32>
    %272 = arith.mulf %270, %271 : vector<32x128xf32>
    %273 = arith.addf %267, %272 : vector<32x128xf32>
    %274 = arith.index_cast %c4_i32 : i32 to index
    %c0_45 = arith.constant 0 : index
    %c0_46 = arith.constant 0 : index
    %275 = vector.load %arg10[%274, %c0_45, %c0_46] : memref<8x32x128xf32, #tpu.memory_space<vmem>>, vector<1x32x128xf32>
    %276 = vector.shape_cast %275 : vector<1x32x128xf32> to vector<32x128xf32>
    %277 = arith.addf %276, %273 : vector<32x128xf32>
    %278 = vector.extract_strided_slice %277 {offsets = [0, 0], sizes = [24, 128], strides = [1, 1]} : vector<32x128xf32> to vector<24x128xf32>
    %279 = arith.negf %278 : vector<24x128xf32>
    %280 = math.exp %279 : vector<24x128xf32>
    %cst_47 = arith.constant 1.000000e+00 : f32
    %281 = vector.broadcast %cst_47 : f32 to vector<24x128xf32>
    %282 = arith.addf %281, %280 : vector<24x128xf32>
    %283 = arith.divf %281, %282 : vector<24x128xf32>
    %284 = vector.extract_strided_slice %277 {offsets = [24, 0], sizes = [8, 128], strides = [1, 1]} : vector<32x128xf32> to vector<8x128xf32>
    %285 = math.tanh %284 : vector<8x128xf32>
    %286 = vector.extract_strided_slice %283 {offsets = [8, 0], sizes = [8, 128], strides = [1, 1]} : vector<24x128xf32> to vector<8x128xf32>
    %287 = arith.mulf %286, %241 : vector<8x128xf32>
    %288 = vector.extract_strided_slice %283 {offsets = [0, 0], sizes = [8, 128], strides = [1, 1]} : vector<24x128xf32> to vector<8x128xf32>
    %289 = arith.mulf %288, %285 : vector<8x128xf32>
    %290 = arith.addf %287, %289 : vector<8x128xf32>
    %291 = vector.extract_strided_slice %283 {offsets = [16, 0], sizes = [8, 128], strides = [1, 1]} : vector<24x128xf32> to vector<8x128xf32>
    %292 = math.tanh %290 : vector<8x128xf32>
    %293 = arith.mulf %291, %292 : vector<8x128xf32>
    %c5_i32 = arith.constant 5 : i32
    %294 = vector.extract_strided_slice %46 {offsets = [0, 0], sizes = [32, 1], strides = [1, 1]} : vector<32x8xf32> to vector<32x1xf32>
    %295 = vector.extract_strided_slice %293 {offsets = [0, 0], sizes = [1, 128], strides = [1, 1]} : vector<8x128xf32> to vector<1x128xf32>
    %296 = vector.broadcast %294 : vector<32x1xf32> to vector<32x128xf32>
    %297 = vector.broadcast %295 : vector<1x128xf32> to vector<32x128xf32>
    %298 = arith.mulf %296, %297 : vector<32x128xf32>
    %299 = vector.extract_strided_slice %46 {offsets = [0, 1], sizes = [32, 1], strides = [1, 1]} : vector<32x8xf32> to vector<32x1xf32>
    %300 = vector.extract_strided_slice %293 {offsets = [1, 0], sizes = [1, 128], strides = [1, 1]} : vector<8x128xf32> to vector<1x128xf32>
    %301 = vector.broadcast %299 : vector<32x1xf32> to vector<32x128xf32>
    %302 = vector.broadcast %300 : vector<1x128xf32> to vector<32x128xf32>
    %303 = arith.mulf %301, %302 : vector<32x128xf32>
    %304 = arith.addf %298, %303 : vector<32x128xf32>
    %305 = vector.extract_strided_slice %46 {offsets = [0, 2], sizes = [32, 1], strides = [1, 1]} : vector<32x8xf32> to vector<32x1xf32>
    %306 = vector.extract_strided_slice %293 {offsets = [2, 0], sizes = [1, 128], strides = [1, 1]} : vector<8x128xf32> to vector<1x128xf32>
    %307 = vector.broadcast %305 : vector<32x1xf32> to vector<32x128xf32>
    %308 = vector.broadcast %306 : vector<1x128xf32> to vector<32x128xf32>
    %309 = arith.mulf %307, %308 : vector<32x128xf32>
    %310 = arith.addf %304, %309 : vector<32x128xf32>
    %311 = vector.extract_strided_slice %46 {offsets = [0, 3], sizes = [32, 1], strides = [1, 1]} : vector<32x8xf32> to vector<32x1xf32>
    %312 = vector.extract_strided_slice %293 {offsets = [3, 0], sizes = [1, 128], strides = [1, 1]} : vector<8x128xf32> to vector<1x128xf32>
    %313 = vector.broadcast %311 : vector<32x1xf32> to vector<32x128xf32>
    %314 = vector.broadcast %312 : vector<1x128xf32> to vector<32x128xf32>
    %315 = arith.mulf %313, %314 : vector<32x128xf32>
    %316 = arith.addf %310, %315 : vector<32x128xf32>
    %317 = vector.extract_strided_slice %46 {offsets = [0, 4], sizes = [32, 1], strides = [1, 1]} : vector<32x8xf32> to vector<32x1xf32>
    %318 = vector.extract_strided_slice %293 {offsets = [4, 0], sizes = [1, 128], strides = [1, 1]} : vector<8x128xf32> to vector<1x128xf32>
    %319 = vector.broadcast %317 : vector<32x1xf32> to vector<32x128xf32>
    %320 = vector.broadcast %318 : vector<1x128xf32> to vector<32x128xf32>
    %321 = arith.mulf %319, %320 : vector<32x128xf32>
    %322 = arith.addf %316, %321 : vector<32x128xf32>
    %323 = arith.index_cast %c5_i32 : i32 to index
    %c0_48 = arith.constant 0 : index
    %c0_49 = arith.constant 0 : index
    %324 = vector.load %arg10[%323, %c0_48, %c0_49] : memref<8x32x128xf32, #tpu.memory_space<vmem>>, vector<1x32x128xf32>
    %325 = vector.shape_cast %324 : vector<1x32x128xf32> to vector<32x128xf32>
    %326 = arith.addf %325, %322 : vector<32x128xf32>
    %327 = vector.extract_strided_slice %326 {offsets = [0, 0], sizes = [24, 128], strides = [1, 1]} : vector<32x128xf32> to vector<24x128xf32>
    %328 = arith.negf %327 : vector<24x128xf32>
    %329 = math.exp %328 : vector<24x128xf32>
    %cst_50 = arith.constant 1.000000e+00 : f32
    %330 = vector.broadcast %cst_50 : f32 to vector<24x128xf32>
    %331 = arith.addf %330, %329 : vector<24x128xf32>
    %332 = arith.divf %330, %331 : vector<24x128xf32>
    %333 = vector.extract_strided_slice %326 {offsets = [24, 0], sizes = [8, 128], strides = [1, 1]} : vector<32x128xf32> to vector<8x128xf32>
    %334 = math.tanh %333 : vector<8x128xf32>
    %335 = vector.extract_strided_slice %332 {offsets = [8, 0], sizes = [8, 128], strides = [1, 1]} : vector<24x128xf32> to vector<8x128xf32>
    %336 = arith.mulf %335, %290 : vector<8x128xf32>
    %337 = vector.extract_strided_slice %332 {offsets = [0, 0], sizes = [8, 128], strides = [1, 1]} : vector<24x128xf32> to vector<8x128xf32>
    %338 = arith.mulf %337, %334 : vector<8x128xf32>
    %339 = arith.addf %336, %338 : vector<8x128xf32>
    %340 = vector.extract_strided_slice %332 {offsets = [16, 0], sizes = [8, 128], strides = [1, 1]} : vector<24x128xf32> to vector<8x128xf32>
    %341 = math.tanh %339 : vector<8x128xf32>
    %342 = arith.mulf %340, %341 : vector<8x128xf32>
    %c6_i32 = arith.constant 6 : i32
    %343 = vector.extract_strided_slice %46 {offsets = [0, 0], sizes = [32, 1], strides = [1, 1]} : vector<32x8xf32> to vector<32x1xf32>
    %344 = vector.extract_strided_slice %342 {offsets = [0, 0], sizes = [1, 128], strides = [1, 1]} : vector<8x128xf32> to vector<1x128xf32>
    %345 = vector.broadcast %343 : vector<32x1xf32> to vector<32x128xf32>
    %346 = vector.broadcast %344 : vector<1x128xf32> to vector<32x128xf32>
    %347 = arith.mulf %345, %346 : vector<32x128xf32>
    %348 = vector.extract_strided_slice %46 {offsets = [0, 1], sizes = [32, 1], strides = [1, 1]} : vector<32x8xf32> to vector<32x1xf32>
    %349 = vector.extract_strided_slice %342 {offsets = [1, 0], sizes = [1, 128], strides = [1, 1]} : vector<8x128xf32> to vector<1x128xf32>
    %350 = vector.broadcast %348 : vector<32x1xf32> to vector<32x128xf32>
    %351 = vector.broadcast %349 : vector<1x128xf32> to vector<32x128xf32>
    %352 = arith.mulf %350, %351 : vector<32x128xf32>
    %353 = arith.addf %347, %352 : vector<32x128xf32>
    %354 = vector.extract_strided_slice %46 {offsets = [0, 2], sizes = [32, 1], strides = [1, 1]} : vector<32x8xf32> to vector<32x1xf32>
    %355 = vector.extract_strided_slice %342 {offsets = [2, 0], sizes = [1, 128], strides = [1, 1]} : vector<8x128xf32> to vector<1x128xf32>
    %356 = vector.broadcast %354 : vector<32x1xf32> to vector<32x128xf32>
    %357 = vector.broadcast %355 : vector<1x128xf32> to vector<32x128xf32>
    %358 = arith.mulf %356, %357 : vector<32x128xf32>
    %359 = arith.addf %353, %358 : vector<32x128xf32>
    %360 = vector.extract_strided_slice %46 {offsets = [0, 3], sizes = [32, 1], strides = [1, 1]} : vector<32x8xf32> to vector<32x1xf32>
    %361 = vector.extract_strided_slice %342 {offsets = [3, 0], sizes = [1, 128], strides = [1, 1]} : vector<8x128xf32> to vector<1x128xf32>
    %362 = vector.broadcast %360 : vector<32x1xf32> to vector<32x128xf32>
    %363 = vector.broadcast %361 : vector<1x128xf32> to vector<32x128xf32>
    %364 = arith.mulf %362, %363 : vector<32x128xf32>
    %365 = arith.addf %359, %364 : vector<32x128xf32>
    %366 = vector.extract_strided_slice %46 {offsets = [0, 4], sizes = [32, 1], strides = [1, 1]} : vector<32x8xf32> to vector<32x1xf32>
    %367 = vector.extract_strided_slice %342 {offsets = [4, 0], sizes = [1, 128], strides = [1, 1]} : vector<8x128xf32> to vector<1x128xf32>
    %368 = vector.broadcast %366 : vector<32x1xf32> to vector<32x128xf32>
    %369 = vector.broadcast %367 : vector<1x128xf32> to vector<32x128xf32>
    %370 = arith.mulf %368, %369 : vector<32x128xf32>
    %371 = arith.addf %365, %370 : vector<32x128xf32>
    %372 = arith.index_cast %c6_i32 : i32 to index
    %c0_51 = arith.constant 0 : index
    %c0_52 = arith.constant 0 : index
    %373 = vector.load %arg10[%372, %c0_51, %c0_52] : memref<8x32x128xf32, #tpu.memory_space<vmem>>, vector<1x32x128xf32>
    %374 = vector.shape_cast %373 : vector<1x32x128xf32> to vector<32x128xf32>
    %375 = arith.addf %374, %371 : vector<32x128xf32>
    %376 = vector.extract_strided_slice %375 {offsets = [0, 0], sizes = [24, 128], strides = [1, 1]} : vector<32x128xf32> to vector<24x128xf32>
    %377 = arith.negf %376 : vector<24x128xf32>
    %378 = math.exp %377 : vector<24x128xf32>
    %cst_53 = arith.constant 1.000000e+00 : f32
    %379 = vector.broadcast %cst_53 : f32 to vector<24x128xf32>
    %380 = arith.addf %379, %378 : vector<24x128xf32>
    %381 = arith.divf %379, %380 : vector<24x128xf32>
    %382 = vector.extract_strided_slice %375 {offsets = [24, 0], sizes = [8, 128], strides = [1, 1]} : vector<32x128xf32> to vector<8x128xf32>
    %383 = math.tanh %382 : vector<8x128xf32>
    %384 = vector.extract_strided_slice %381 {offsets = [8, 0], sizes = [8, 128], strides = [1, 1]} : vector<24x128xf32> to vector<8x128xf32>
    %385 = arith.mulf %384, %339 : vector<8x128xf32>
    %386 = vector.extract_strided_slice %381 {offsets = [0, 0], sizes = [8, 128], strides = [1, 1]} : vector<24x128xf32> to vector<8x128xf32>
    %387 = arith.mulf %386, %383 : vector<8x128xf32>
    %388 = arith.addf %385, %387 : vector<8x128xf32>
    %389 = vector.extract_strided_slice %381 {offsets = [16, 0], sizes = [8, 128], strides = [1, 1]} : vector<24x128xf32> to vector<8x128xf32>
    %390 = math.tanh %388 : vector<8x128xf32>
    %391 = arith.mulf %389, %390 : vector<8x128xf32>
    %c7_i32 = arith.constant 7 : i32
    %392 = vector.extract_strided_slice %46 {offsets = [0, 0], sizes = [32, 1], strides = [1, 1]} : vector<32x8xf32> to vector<32x1xf32>
    %393 = vector.extract_strided_slice %391 {offsets = [0, 0], sizes = [1, 128], strides = [1, 1]} : vector<8x128xf32> to vector<1x128xf32>
    %394 = vector.broadcast %392 : vector<32x1xf32> to vector<32x128xf32>
    %395 = vector.broadcast %393 : vector<1x128xf32> to vector<32x128xf32>
    %396 = arith.mulf %394, %395 : vector<32x128xf32>
    %397 = vector.extract_strided_slice %46 {offsets = [0, 1], sizes = [32, 1], strides = [1, 1]} : vector<32x8xf32> to vector<32x1xf32>
    %398 = vector.extract_strided_slice %391 {offsets = [1, 0], sizes = [1, 128], strides = [1, 1]} : vector<8x128xf32> to vector<1x128xf32>
    %399 = vector.broadcast %397 : vector<32x1xf32> to vector<32x128xf32>
    %400 = vector.broadcast %398 : vector<1x128xf32> to vector<32x128xf32>
    %401 = arith.mulf %399, %400 : vector<32x128xf32>
    %402 = arith.addf %396, %401 : vector<32x128xf32>
    %403 = vector.extract_strided_slice %46 {offsets = [0, 2], sizes = [32, 1], strides = [1, 1]} : vector<32x8xf32> to vector<32x1xf32>
    %404 = vector.extract_strided_slice %391 {offsets = [2, 0], sizes = [1, 128], strides = [1, 1]} : vector<8x128xf32> to vector<1x128xf32>
    %405 = vector.broadcast %403 : vector<32x1xf32> to vector<32x128xf32>
    %406 = vector.broadcast %404 : vector<1x128xf32> to vector<32x128xf32>
    %407 = arith.mulf %405, %406 : vector<32x128xf32>
    %408 = arith.addf %402, %407 : vector<32x128xf32>
    %409 = vector.extract_strided_slice %46 {offsets = [0, 3], sizes = [32, 1], strides = [1, 1]} : vector<32x8xf32> to vector<32x1xf32>
    %410 = vector.extract_strided_slice %391 {offsets = [3, 0], sizes = [1, 128], strides = [1, 1]} : vector<8x128xf32> to vector<1x128xf32>
    %411 = vector.broadcast %409 : vector<32x1xf32> to vector<32x128xf32>
    %412 = vector.broadcast %410 : vector<1x128xf32> to vector<32x128xf32>
    %413 = arith.mulf %411, %412 : vector<32x128xf32>
    %414 = arith.addf %408, %413 : vector<32x128xf32>
    %415 = vector.extract_strided_slice %46 {offsets = [0, 4], sizes = [32, 1], strides = [1, 1]} : vector<32x8xf32> to vector<32x1xf32>
    %416 = vector.extract_strided_slice %391 {offsets = [4, 0], sizes = [1, 128], strides = [1, 1]} : vector<8x128xf32> to vector<1x128xf32>
    %417 = vector.broadcast %415 : vector<32x1xf32> to vector<32x128xf32>
    %418 = vector.broadcast %416 : vector<1x128xf32> to vector<32x128xf32>
    %419 = arith.mulf %417, %418 : vector<32x128xf32>
    %420 = arith.addf %414, %419 : vector<32x128xf32>
    %421 = arith.index_cast %c7_i32 : i32 to index
    %c0_54 = arith.constant 0 : index
    %c0_55 = arith.constant 0 : index
    %422 = vector.load %arg10[%421, %c0_54, %c0_55] : memref<8x32x128xf32, #tpu.memory_space<vmem>>, vector<1x32x128xf32>
    %423 = vector.shape_cast %422 : vector<1x32x128xf32> to vector<32x128xf32>
    %424 = arith.addf %423, %420 : vector<32x128xf32>
    %425 = vector.extract_strided_slice %424 {offsets = [0, 0], sizes = [24, 128], strides = [1, 1]} : vector<32x128xf32> to vector<24x128xf32>
    %426 = arith.negf %425 : vector<24x128xf32>
    %427 = math.exp %426 : vector<24x128xf32>
    %cst_56 = arith.constant 1.000000e+00 : f32
    %428 = vector.broadcast %cst_56 : f32 to vector<24x128xf32>
    %429 = arith.addf %428, %427 : vector<24x128xf32>
    %430 = arith.divf %428, %429 : vector<24x128xf32>
    %431 = vector.extract_strided_slice %424 {offsets = [24, 0], sizes = [8, 128], strides = [1, 1]} : vector<32x128xf32> to vector<8x128xf32>
    %432 = math.tanh %431 : vector<8x128xf32>
    %433 = vector.extract_strided_slice %430 {offsets = [8, 0], sizes = [8, 128], strides = [1, 1]} : vector<24x128xf32> to vector<8x128xf32>
    %434 = arith.mulf %433, %388 : vector<8x128xf32>
    %435 = vector.extract_strided_slice %430 {offsets = [0, 0], sizes = [8, 128], strides = [1, 1]} : vector<24x128xf32> to vector<8x128xf32>
    %436 = arith.mulf %435, %432 : vector<8x128xf32>
    %437 = arith.addf %434, %436 : vector<8x128xf32>
    %438 = vector.extract_strided_slice %430 {offsets = [16, 0], sizes = [8, 128], strides = [1, 1]} : vector<24x128xf32> to vector<8x128xf32>
    %439 = math.tanh %437 : vector<8x128xf32>
    %440 = arith.mulf %438, %439 : vector<8x128xf32>
    %c8_i32 = arith.constant 8 : i32
    %c0_57 = arith.constant 0 : index
    %441 = memref.load %arg8[%c0_57] : memref<11xf32, #tpu.memory_space<smem>>
    %442 = vector.extract_strided_slice %440 {offsets = [0, 0], sizes = [1, 128], strides = [1, 1]} : vector<8x128xf32> to vector<1x128xf32>
    %443 = vector.broadcast %441 : f32 to vector<1x128xf32>
    %444 = arith.mulf %443, %442 : vector<1x128xf32>
    %c1_58 = arith.constant 1 : index
    %445 = memref.load %arg8[%c1_58] : memref<11xf32, #tpu.memory_space<smem>>
    %446 = vector.extract_strided_slice %440 {offsets = [1, 0], sizes = [1, 128], strides = [1, 1]} : vector<8x128xf32> to vector<1x128xf32>
    %447 = vector.broadcast %445 : f32 to vector<1x128xf32>
    %448 = arith.mulf %447, %446 : vector<1x128xf32>
    %449 = arith.addf %444, %448 : vector<1x128xf32>
    %c2_59 = arith.constant 2 : index
    %450 = memref.load %arg8[%c2_59] : memref<11xf32, #tpu.memory_space<smem>>
    %451 = vector.extract_strided_slice %440 {offsets = [2, 0], sizes = [1, 128], strides = [1, 1]} : vector<8x128xf32> to vector<1x128xf32>
    %452 = vector.broadcast %450 : f32 to vector<1x128xf32>
    %453 = arith.mulf %452, %451 : vector<1x128xf32>
    %454 = arith.addf %449, %453 : vector<1x128xf32>
    %c3_60 = arith.constant 3 : index
    %455 = memref.load %arg8[%c3_60] : memref<11xf32, #tpu.memory_space<smem>>
    %456 = vector.extract_strided_slice %440 {offsets = [3, 0], sizes = [1, 128], strides = [1, 1]} : vector<8x128xf32> to vector<1x128xf32>
    %457 = vector.broadcast %455 : f32 to vector<1x128xf32>
    %458 = arith.mulf %457, %456 : vector<1x128xf32>
    %459 = arith.addf %454, %458 : vector<1x128xf32>
    %c4_61 = arith.constant 4 : index
    %460 = memref.load %arg8[%c4_61] : memref<11xf32, #tpu.memory_space<smem>>
    %461 = vector.extract_strided_slice %440 {offsets = [4, 0], sizes = [1, 128], strides = [1, 1]} : vector<8x128xf32> to vector<1x128xf32>
    %462 = vector.broadcast %460 : f32 to vector<1x128xf32>
    %463 = arith.mulf %462, %461 : vector<1x128xf32>
    %464 = arith.addf %459, %463 : vector<1x128xf32>
    %c5_62 = arith.constant 5 : index
    %465 = memref.load %arg8[%c5_62] : memref<11xf32, #tpu.memory_space<smem>>
    %466 = vector.broadcast %465 : f32 to vector<1x128xf32>
    %467 = arith.addf %464, %466 : vector<1x128xf32>
    %468 = math.tanh %467 : vector<1x128xf32>
    %c6_63 = arith.constant 6 : index
    %469 = memref.load %arg8[%c6_63] : memref<11xf32, #tpu.memory_space<smem>>
    %c0_64 = arith.constant 0 : index
    %c0_65 = arith.constant 0 : index
    %470 = vector.load %arg2[%c0_64, %c0_65] : memref<1x128xf32, #tpu.memory_space<vmem>>, vector<1x128xf32>
    %471 = vector.broadcast %469 : f32 to vector<1x128xf32>
    %472 = arith.mulf %471, %470 : vector<1x128xf32>
    %c7_66 = arith.constant 7 : index
    %473 = memref.load %arg8[%c7_66] : memref<11xf32, #tpu.memory_space<smem>>
    %474 = vector.broadcast %473 : f32 to vector<1x128xf32>
    %475 = arith.addf %472, %474 : vector<1x128xf32>
    %476 = math.tanh %475 : vector<1x128xf32>
    %c8 = arith.constant 8 : index
    %477 = memref.load %arg8[%c8] : memref<11xf32, #tpu.memory_space<smem>>
    %478 = vector.broadcast %477 : f32 to vector<1x128xf32>
    %479 = arith.mulf %478, %476 : vector<1x128xf32>
    %c9 = arith.constant 9 : index
    %480 = memref.load %arg8[%c9] : memref<11xf32, #tpu.memory_space<smem>>
    %481 = vector.broadcast %480 : f32 to vector<1x128xf32>
    %482 = arith.mulf %481, %468 : vector<1x128xf32>
    %483 = arith.addf %479, %482 : vector<1x128xf32>
    %c10 = arith.constant 10 : index
    %484 = memref.load %arg8[%c10] : memref<11xf32, #tpu.memory_space<smem>>
    %485 = vector.broadcast %484 : f32 to vector<1x128xf32>
    %486 = arith.addf %483, %485 : vector<1x128xf32>
    %487 = arith.negf %486 : vector<1x128xf32>
    %488 = math.exp %487 : vector<1x128xf32>
    %cst_67 = arith.constant 1.000000e+00 : f32
    %489 = vector.broadcast %cst_67 : f32 to vector<1x128xf32>
    %490 = arith.addf %489, %488 : vector<1x128xf32>
    %491 = arith.divf %489, %490 : vector<1x128xf32>
    %c0_68 = arith.constant 0 : index
    %c0_69 = arith.constant 0 : index
    %492 = vector.load %arg9[%c0_68, %c0_69] : memref<1x128xf32, #tpu.memory_space<vmem>>, vector<1x128xf32>
    tpu.vector_store %arg9[%c0_68, %c0_69], %491 {strides = array<i32>} : memref<1x128xf32, #tpu.memory_space<vmem>>, vector<1x128xf32>,
    return
  }
  func.func @transform_0(%arg0: i32) -> (i32, i32, i32) {
    %c0_i32 = arith.constant 0 : i32
    %c0_i32_0 = arith.constant 0 : i32
    %c0_i32_1 = arith.constant 0 : i32
    return %arg0, %c0_i32, %c0_i32_0 : i32, i32, i32
  }
  func.func @transform_1(%arg0: i32) -> (i32, i32) {
    %c0_i32 = arith.constant 0 : i32
    %c0_i32_0 = arith.constant 0 : i32
    return %c0_i32, %arg0 : i32, i32
  }
  func.func @transform_2(%arg0: i32) -> (i32, i32) {
    %c0_i32 = arith.constant 0 : i32
    %c0_i32_0 = arith.constant 0 : i32
    %c0_i32_1 = arith.constant 0 : i32
    return %c0_i32, %c0_i32_0 : i32, i32
  }
  func.func @transform_3(%arg0: i32) -> (i32, i32) {
    %c0_i32 = arith.constant 0 : i32
    %c0_i32_0 = arith.constant 0 : i32
    %c0_i32_1 = arith.constant 0 : i32
    return %c0_i32, %c0_i32_0 : i32, i32
  }
  func.func @transform_4(%arg0: i32) -> (i32, i32) {
    %c0_i32 = arith.constant 0 : i32
    %c0_i32_0 = arith.constant 0 : i32
    %c0_i32_1 = arith.constant 0 : i32
    return %c0_i32, %c0_i32_0 : i32, i32
  }
  func.func @transform_5(%arg0: i32) -> (i32, i32) {
    %c0_i32 = arith.constant 0 : i32
    %c0_i32_0 = arith.constant 0 : i32
    %c0_i32_1 = arith.constant 0 : i32
    return %c0_i32, %c0_i32_0 : i32, i32
  }
  func.func @transform_6(%arg0: i32) -> (i32, i32) {
    %c0_i32 = arith.constant 0 : i32
    %c0_i32_0 = arith.constant 0 : i32
    %c0_i32_1 = arith.constant 0 : i32
    return %c0_i32, %c0_i32_0 : i32, i32
  }
  func.func @transform_7(%arg0: i32) -> i32 {
    %c0_i32 = arith.constant 0 : i32
    %c0_i32_0 = arith.constant 0 : i32
    return %c0_i32 : i32
  }
  func.func @transform_8(%arg0: i32) -> (i32, i32) {
    %c0_i32 = arith.constant 0 : i32
    %c0_i32_0 = arith.constant 0 : i32
    return %c0_i32, %arg0 : i32, i32
  }
}

</mosaic_0001>

<llo_original>
// kernel: tpu_custom_call.1
$region0: #{tpu_custom_call.1}
  #allocation0 [shape = 'u32[]', space=smem, size = 0x4, offset = 0x4, fixed_abs, tag = 'smem constant byte address 0x4 - core index']
  #allocation1 [shape = 'u32[144,128]{1,0:T(1,128)}', space=vmem, size = 0x12000, scoped, tag = 'internal scratch']
  #allocation2 [shape = 'f32[8,32,128]{2,1,0:T(8,128)}', space=vmem, size = 0x20000, scoped, tag = 'scratch operand']
  %s0 = inlined_call_operand.vmem [shape: f32[1,4,1024], index: 0, kind: input, shape index: {}]
  %s1 = inlined_call_operand.vmem [shape: f32[1,128], index: 1, kind: input, shape index: {}]
  %s2 = inlined_call_operand.vmem [shape: f32[16,4], index: 2, kind: input, shape index: {}]
  %s3 = inlined_call_operand.vmem [shape: f32[16,1], index: 3, kind: input, shape index: {}]
  %s4 = inlined_call_operand.vmem [shape: f32[32,16], index: 4, kind: input, shape index: {}]
  %s5 = inlined_call_operand.vmem [shape: f32[32,8], index: 5, kind: input, shape index: {}]
  %s6 = inlined_call_operand.vmem [shape: f32[32,1], index: 6, kind: input, shape index: {}]
  %s7 = inlined_call_operand.vmem [shape: f32[11], index: 7, kind: input, shape index: {}]
  %s8 = inlined_call_operand.hbm [shape: f32[1,128], index: 8, kind: output, shape index: {}]
  %s9 = sld [smem:[#allocation0]]
  $region46: #{tpu_custom_call.1} parent=0
    _
  %s11 = ssub.s32 1, %s9
  %s12 = scalar_select 0, %s11, %s9
  $region1: #{tpu_custom_call.1} parent=0
    #allocation3 [shape = 'u8[512]{0}', space=smem, size = 0x200, scoped, tag = 'input window, operand 7, single buffered']
    #allocation4 [shape = 's32[1]{0}', space=sflag, size = 0x4, scoped, tag = 'scoped memory for tpu_custom_call.1']
    #allocation5 [shape = 's32[1]{0}', space=sflag, size = 0x4, scoped, tag = 'scoped memory for tpu_custom_call.1']
    #allocation6 [shape = 'u8[512]{0}', space=vmem, size = 0x400, scoped, tag = 'output window, operand 0, single buffered']
    %13 = vsyncpa [#allocation5], 0
    %14 = vsyncpa [#allocation4], 0
    // Predicated region
    $region2: #{tpu_custom_call.1} parent=1 // pred_check
      _
    $region3: #{tpu_custom_call.1} parent=1 // pred_check_branch
      %16 = sbr.rel (0) target = $region5
    $region4: #{tpu_custom_call.1} parent=1 // pred_region
      _
    $region5: #{tpu_custom_call.1} parent=1 // pred_fallthru
      _
    // Predicated region
    $region6: #{tpu_custom_call.1} parent=1 // pred_check
      _
    $region7: #{tpu_custom_call.1} parent=1 // pred_check_branch
      %18 = sbr.rel (0) target = $region9
    $region8: #{tpu_custom_call.1} parent=1 // pred_region
      _
    $region9: #{tpu_custom_call.1} parent=1 // pred_fallthru
      _
    // Predicated region
    $region10: #{tpu_custom_call.1} parent=1 // pred_check
      _
    $region11: #{tpu_custom_call.1} parent=1 // pred_check_branch
      %20 = sbr.rel (0) target = $region13
    $region12: #{tpu_custom_call.1} parent=1 // pred_region
      _
    $region13: #{tpu_custom_call.1} parent=1 // pred_fallthru
      _
    // Predicated region
    $region14: #{tpu_custom_call.1} parent=1 // pred_check
      _
    $region15: #{tpu_custom_call.1} parent=1 // pred_check_branch
      %22 = sbr.rel (0) target = $region17
    $region16: #{tpu_custom_call.1} parent=1 // pred_region
      _
    $region17: #{tpu_custom_call.1} parent=1 // pred_fallthru
      _
    // Predicated region
    $region18: #{tpu_custom_call.1} parent=1 // pred_check
      _
    $region19: #{tpu_custom_call.1} parent=1 // pred_check_branch
      %24 = sbr.rel (0) target = $region21
    $region20: #{tpu_custom_call.1} parent=1 // pred_region
      _
    $region21: #{tpu_custom_call.1} parent=1 // pred_fallthru
      _
    // Predicated region
    $region22: #{tpu_custom_call.1} parent=1 // pred_check
      _
    $region23: #{tpu_custom_call.1} parent=1 // pred_check_branch
      %26 = sbr.rel (0) target = $region25
    $region24: #{tpu_custom_call.1} parent=1 // pred_region
      _
    $region25: #{tpu_custom_call.1} parent=1 // pred_fallthru
      _
    // Predicated region
    $region26: #{tpu_custom_call.1} parent=1 // pred_check
      _
    $region27: #{tpu_custom_call.1} parent=1 // pred_check_branch
      %28 = sbr.rel (0) target = $region29
    $region28: #{tpu_custom_call.1} parent=1 // pred_region
      _
    $region29: #{tpu_custom_call.1} parent=1 // pred_fallthru
      _
    // Predicated region
    $region30: #{tpu_custom_call.1} parent=1 // pred_check
      _
    $region31: #{tpu_custom_call.1} parent=1 // pred_check_branch
      %30 = sbr.rel (0) target = $region33
    $region32: #{tpu_custom_call.1} parent=1 // pred_region
      %s32 = ssub.s32 16, 16
      %33 = vsyncadd [#allocation5], %s32
      %s35 = sshll.u32 %s7, 4
      %s36 = int_to_ptr.vmem [resolvable:$true] %s35
      %38 = dma.vmem_to_smem %s36, 16, [#allocation3], [#allocation5]
    $region33: #{tpu_custom_call.1} parent=1 // pred_fallthru
      _
    // Predicated region
    $region34: #{tpu_custom_call.1} parent=1 // pred_check
      _
    $region35: #{tpu_custom_call.1} parent=1 // pred_check_branch
      %40 = sbr.rel (0) target = $region37
    $region36: #{tpu_custom_call.1} parent=1 // pred_region
      %41 = dma.done [#allocation5], 16
    $region37: #{tpu_custom_call.1} parent=1 // pred_fallthru
      _
    %42 = sfence
    %v43 = vld [vmem:[%s0] sm:$0xff]
    %v44 = vld [vmem:[%s0 + $0x8] sm:$0xff]
    %v45 = vld [vmem:[%s0 + $0x10] sm:$0xff]
    %v46 = vld [vmem:[%s0 + $0x18] sm:$0xff]
    %v47 = vld [vmem:[%s2] sm:$0xff]
    %v48 = vld [vmem:[%s2 + $0x8] sm:$0xff]
    %v49 = vld [vmem:[%s3] sm:$0xff]
    %v50 = vld [vmem:[%s3 + $0x8] sm:$0xff]
    %52 = vset.pattern.permute.xlu0 0
    %53 = vperm.xlu0 %52, %v49
    %v54 = vpop.permute.xlu0 %53
    %57 = vset.pattern.permute.xlu0 0
    %58 = vperm.xlu0 %57, %v50
    %v59 = vpop.permute.xlu0 %58
    %v65 = vcombine.high %v43, %v43
    %v66 = vcombine.high %v44, %v44
    %v67 = vcombine.high %v45, %v45
    %v68 = vcombine.high %v46, %v46
    %vm69 = vcmask 31744
    %v71 = vsel %vm69, %v47, 0
    %v74 = vsel %vm69, %v48, 0
    %vm76 = vcmask 1043456
    %v77 = vsel %vm76, %v43, 0
    %v79 = vsel %vm76, %v65, 0
    %v81 = vsel %vm76, %v44, 0
    %v83 = vsel %vm76, %v66, 0
    %v85 = vsel %vm76, %v45, 0
    %v87 = vsel %vm76, %v67, 0
    %v89 = vsel %vm76, %v46, 0
    %v91 = vsel %vm76, %v68, 0
    %93 = vmatprep.subr.mxu0 %v79
    %94 = vmatpush1.msra.mxu0 %v77
    %95 = vmatprep.subr.mxu0 0.0
    %96 = vmatpush1.msra.mxu0 0.0
    %97 = vmatprep.subr.mxu0 0.0
    %98 = vmatpush1.msra.mxu0 0.0
    %99 = vmatprep.subr.mxu0 0.0
    %100 = vmatpush1.msra.mxu0 0.0
    %101 = vmatprep.subr.mxu0 0.0
    %102 = vmatpush1.msra.mxu0 0.0
    %103 = vmatprep.subr.mxu0 0.0
    %104 = vmatpush1.msra.mxu0 0.0
    %105 = vmatprep.subr.mxu0 0.0
    %106 = vmatpush1.msra.mxu0 0.0
    %107 = vmatprep.subr.mxu0 0.0
    %108 = vmatpush1.msra.mxu0 0.0
    %109 = vmatprep.subr.mxu0 0.0
    %110 = vmatpush1.msra.mxu0 0.0
    %111 = vmatprep.subr.mxu0 0.0
    %112 = vmatpush1.msra.mxu0 0.0
    %113 = vmatprep.subr.mxu0 0.0
    %114 = vmatpush1.msra.mxu0 0.0
    %115 = vmatprep.subr.mxu0 0.0
    %116 = vmatpush1.msra.mxu0 0.0
    %117 = vmatprep.subr.mxu0 0.0
    %118 = vmatpush1.msra.mxu0 0.0
    %119 = vmatprep.subr.mxu0 0.0
    %120 = vmatpush1.msra.mxu0 0.0
    %121 = vmatprep.subr.mxu0 0.0
    %122 = vmatpush1.msra.mxu0 0.0
    %123 = vmatprep.subr.mxu0 0.0
    %124 = vmatpush1.msra.mxu0 0.0
    %125 = vmatprep.subr.mxu0 0.0
    %126 = vmatpush1.msra.mxu0 0.0
    %127 = vmatprep.subr.mxu0 0.0
    %128 = vmatpush1.msra.mxu0 0.0
    %129 = vmatprep.subr.mxu0 0.0
    %130 = vmatpush1.msra.mxu0 0.0
    %131 = vmatprep.subr.mxu0 0.0
    %132 = vmatpush1.msra.mxu0 0.0
    %133 = vmatprep.subr.mxu0 0.0
    %134 = vmatpush1.msra.mxu0 0.0
    %135 = vmatprep.subr.mxu0 0.0
    %136 = vmatpush1.msra.mxu0 0.0
    %137 = vmatprep.subr.mxu0 0.0
    %138 = vmatpush1.msra.mxu0 0.0
    %139 = vmatprep.subr.mxu0 0.0
    %140 = vmatpush1.msra.mxu0 0.0
    %141 = vmatprep.subr.mxu0 0.0
    %142 = vmatpush1.msra.mxu0 0.0
    %143 = vmatprep.subr.mxu0 0.0
    %144 = vmatpush1.msra.mxu0 0.0
    %145 = vmatprep.subr.mxu0 0.0
    %146 = vmatpush1.msra.mxu0 0.0
    %147 = vmatprep.subr.mxu0 0.0
    %148 = vmatpush1.msra.mxu0 0.0
    %149 = vmatprep.subr.mxu0 0.0
    %150 = vmatpush1.msra.mxu0 0.0
    %151 = vmatprep.subr.mxu0 0.0
    %152 = vmatpush1.msra.mxu0 0.0
    %153 = vmatprep.subr.mxu0 0.0
    %154 = vmatpush1.msra.mxu0 0.0
    %155 = vmatprep.subr.mxu0 0.0
    %156 = vmatpush1.msra.mxu0 0.0
    %157 = vmatprep.mubr.f32.mxu0 0.0
    %158 = vmatmul.mubr.f32.gmra.mrb[0].mxu0 %v71
    %v159 = vpop.f32.mrb[0].mxu0
    %v160 = vadd.f32 %v54, %v159
    %v161 = vpop.f32.mrb[0].mxu0
    %v162 = vadd.f32 %v54, %v161
    %163 = vmatprep.mubr.f32.mxu0 0.0
    %164 = vmatmul.mubr.f32.gmra.mrb[0].mxu0 %v74
    %v165 = vpop.f32.mrb[0].mxu0
    %v166 = vadd.f32 %v59, %v165
    %v167 = vpop.f32.mrb[0].mxu0
    %v168 = vadd.f32 %v59, %v167
    %169 = vdwg.mxu0
    %170 = vmatprep.subr.mxu0 %v83
    %171 = vmatpush1.msra.mxu0 %v81
    %172 = vmatprep.subr.mxu0 0.0
    %173 = vmatpush1.msra.mxu0 0.0
    %174 = vmatprep.subr.mxu0 0.0
    %175 = vmatpush1.msra.mxu0 0.0
    %176 = vmatprep.subr.mxu0 0.0
    %177 = vmatpush1.msra.mxu0 0.0
    %178 = vmatprep.subr.mxu0 0.0
    %179 = vmatpush1.msra.mxu0 0.0
    %180 = vmatprep.subr.mxu0 0.0
    %181 = vmatpush1.msra.mxu0 0.0
    %182 = vmatprep.subr.mxu0 0.0
    %183 = vmatpush1.msra.mxu0 0.0
    %184 = vmatprep.subr.mxu0 0.0
    %185 = vmatpush1.msra.mxu0 0.0
    %186 = vmatprep.subr.mxu0 0.0
    %187 = vmatpush1.msra.mxu0 0.0
    %188 = vmatprep.subr.mxu0 0.0
    %189 = vmatpush1.msra.mxu0 0.0
    %190 = vmatprep.subr.mxu0 0.0
    %191 = vmatpush1.msra.mxu0 0.0
    %192 = vmatprep.subr.mxu0 0.0
    %193 = vmatpush1.msra.mxu0 0.0
    %194 = vmatprep.subr.mxu0 0.0
    %195 = vmatpush1.msra.mxu0 0.0
    %196 = vmatprep.subr.mxu0 0.0
    %197 = vmatpush1.msra.mxu0 0.0
    %198 = vmatprep.subr.mxu0 0.0
    %199 = vmatpush1.msra.mxu0 0.0
    %200 = vmatprep.subr.mxu0 0.0
    %201 = vmatpush1.msra.mxu0 0.0
    %202 = vmatprep.subr.mxu0 0.0
    %203 = vmatpush1.msra.mxu0 0.0
    %204 = vmatprep.subr.mxu0 0.0
    %205 = vmatpush1.msra.mxu0 0.0
    %206 = vmatprep.subr.mxu0 0.0
    %207 = vmatpush1.msra.mxu0 0.0
    %208 = vmatprep.subr.mxu0 0.0
    %209 = vmatpush1.msra.mxu0 0.0
    %210 = vmatprep.subr.mxu0 0.0
    %211 = vmatpush1.msra.mxu0 0.0
    %212 = vmatprep.subr.mxu0 0.0
    %213 = vmatpush1.msra.mxu0 0.0
    %214 = vmatprep.subr.mxu0 0.0
    %215 = vmatpush1.msra.mxu0 0.0
    %216 = vmatprep.subr.mxu0 0.0
    %217 = vmatpush1.msra.mxu0 0.0
    %218 = vmatprep.subr.mxu0 0.0
    %219 = vmatpush1.msra.mxu0 0.0
    %220 = vmatprep.subr.mxu0 0.0
    %221 = vmatpush1.msra.mxu0 0.0
    %222 = vmatprep.subr.mxu0 0.0
    %223 = vmatpush1.msra.mxu0 0.0
    %224 = vmatprep.subr.mxu0 0.0
    %225 = vmatpush1.msra.mxu0 0.0
    %226 = vmatprep.subr.mxu0 0.0
    %227 = vmatpush1.msra.mxu0 0.0
    %228 = vmatprep.subr.mxu0 0.0
    %229 = vmatpush1.msra.mxu0 0.0
    %230 = vmatprep.subr.mxu0 0.0
    %231 = vmatpush1.msra.mxu0 0.0
    %232 = vmatprep.subr.mxu0 0.0
    %233 = vmatpush1.msra.mxu0 0.0
    %234 = vmatprep.mubr.f32.mxu0 0.0
    %235 = vmatmul.mubr.f32.gmra.mrb[0].mxu0 %v71
    %v236 = vpop.f32.mrb[0].mxu0
    %v237 = vadd.f32 %v54, %v236
    %v238 = vpop.f32.mrb[0].mxu0
    %v239 = vadd.f32 %v54, %v238
    %240 = vmatprep.mubr.f32.mxu0 0.0
    %241 = vmatmul.mubr.f32.gmra.mrb[0].mxu0 %v74
    %v242 = vpop.f32.mrb[0].mxu0
    %v243 = vadd.f32 %v59, %v242
    %v244 = vpop.f32.mrb[0].mxu0
    %v245 = vadd.f32 %v59, %v244
    %246 = vdwg.mxu0
    %247 = vmatprep.subr.mxu0 %v87
    %248 = vmatpush1.msra.mxu0 %v85
    %249 = vmatprep.subr.mxu0 0.0
    %250 = vmatpush1.msra.mxu0 0.0
    %251 = vmatprep.subr.mxu0 0.0
    %252 = vmatpush1.msra.mxu0 0.0
    %253 = vmatprep.subr.mxu0 0.0
    %254 = vmatpush1.msra.mxu0 0.0
    %255 = vmatprep.subr.mxu0 0.0
    %256 = vmatpush1.msra.mxu0 0.0
    %257 = vmatprep.subr.mxu0 0.0
    %258 = vmatpush1.msra.mxu0 0.0
    %259 = vmatprep.subr.mxu0 0.0
    %260 = vmatpush1.msra.mxu0 0.0
    %261 = vmatprep.subr.mxu0 0.0
    %262 = vmatpush1.msra.mxu0 0.0
    %263 = vmatprep.subr.mxu0 0.0
    %264 = vmatpush1.msra.mxu0 0.0
    %265 = vmatprep.subr.mxu0 0.0
    %266 = vmatpush1.msra.mxu0 0.0
    %267 = vmatprep.subr.mxu0 0.0
    %268 = vmatpush1.msra.mxu0 0.0
    %269 = vmatprep.subr.mxu0 0.0
    %270 = vmatpush1.msra.mxu0 0.0
    %271 = vmatprep.subr.mxu0 0.0
    %272 = vmatpush1.msra.mxu0 0.0
    %273 = vmatprep.subr.mxu0 0.0
    %274 = vmatpush1.msra.mxu0 0.0
    %275 = vmatprep.subr.mxu0 0.0
    %276 = vmatpush1.msra.mxu0 0.0
    %277 = vmatprep.subr.mxu0 0.0
    %278 = vmatpush1.msra.mxu0 0.0
    %279 = vmatprep.subr.mxu0 0.0
    %280 = vmatpush1.msra.mxu0 0.0
    %281 = vmatprep.subr.mxu0 0.0
    %282 = vmatpush1.msra.mxu0 0.0
    %283 = vmatprep.subr.mxu0 0.0
    %284 = vmatpush1.msra.mxu0 0.0
    %285 = vmatprep.subr.mxu0 0.0
    %286 = vmatpush1.msra.mxu0 0.0
    %287 = vmatprep.subr.mxu0 0.0
    %288 = vmatpush1.msra.mxu0 0.0
    %289 = vmatprep.subr.mxu0 0.0
    %290 = vmatpush1.msra.mxu0 0.0
    %291 = vmatprep.subr.mxu0 0.0
    %292 = vmatpush1.msra.mxu0 0.0
    %293 = vmatprep.subr.mxu0 0.0
    %294 = vmatpush1.msra.mxu0 0.0
    %295 = vmatprep.subr.mxu0 0.0
    %296 = vmatpush1.msra.mxu0 0.0
    %297 = vmatprep.subr.mxu0 0.0
    %298 = vmatpush1.msra.mxu0 0.0
    %299 = vmatprep.subr.mxu0 0.0
    %300 = vmatpush1.msra.mxu0 0.0
    %301 = vmatprep.subr.mxu0 0.0
    %302 = vmatpush1.msra.mxu0 0.0
    %303 = vmatprep.subr.mxu0 0.0
    %304 = vmatpush1.msra.mxu0 0.0
    %305 = vmatprep.subr.mxu0 0.0
    %306 = vmatpush1.msra.mxu0 0.0
    %307 = vmatprep.subr.mxu0 0.0
    %308 = vmatpush1.msra.mxu0 0.0
    %309 = vmatprep.subr.mxu0 0.0
    %310 = vmatpush1.msra.mxu0 0.0
    %311 = vmatprep.mubr.f32.mxu0 0.0
    %312 = vmatmul.mubr.f32.gmra.mrb[0].mxu0 %v71
    %v313 = vpop.f32.mrb[0].mxu0
    %v314 = vadd.f32 %v54, %v313
    %v315 = vpop.f32.mrb[0].mxu0
    %v316 = vadd.f32 %v54, %v315
    %317 = vmatprep.mubr.f32.mxu0 0.0
    %318 = vmatmul.mubr.f32.gmra.mrb[0].mxu0 %v74
    %v319 = vpop.f32.mrb[0].mxu0
    %v320 = vadd.f32 %v59, %v319
    %v321 = vpop.f32.mrb[0].mxu0
    %v322 = vadd.f32 %v59, %v321
    %323 = vdwg.mxu0
    %324 = vmatprep.subr.mxu0 %v91
    %325 = vmatpush1.msra.mxu0 %v89
    %326 = vmatprep.subr.mxu0 0.0
    %327 = vmatpush1.msra.mxu0 0.0
    %328 = vmatprep.subr.mxu0 0.0
    %329 = vmatpush1.msra.mxu0 0.0
    %330 = vmatprep.subr.mxu0 0.0
    %331 = vmatpush1.msra.mxu0 0.0
    %332 = vmatprep.subr.mxu0 0.0
    %333 = vmatpush1.msra.mxu0 0.0
    %334 = vmatprep.subr.mxu0 0.0
    %335 = vmatpush1.msra.mxu0 0.0
    %336 = vmatprep.subr.mxu0 0.0
    %337 = vmatpush1.msra.mxu0 0.0
    %338 = vmatprep.subr.mxu0 0.0
    %339 = vmatpush1.msra.mxu0 0.0
    %340 = vmatprep.subr.mxu0 0.0
    %341 = vmatpush1.msra.mxu0 0.0
    %342 = vmatprep.subr.mxu0 0.0
    %343 = vmatpush1.msra.mxu0 0.0
    %344 = vmatprep.subr.mxu0 0.0
    %345 = vmatpush1.msra.mxu0 0.0
    %346 = vmatprep.subr.mxu0 0.0
    %347 = vmatpush1.msra.mxu0 0.0
    %348 = vmatprep.subr.mxu0 0.0
    %349 = vmatpush1.msra.mxu0 0.0
    %350 = vmatprep.subr.mxu0 0.0
    %351 = vmatpush1.msra.mxu0 0.0
    %352 = vmatprep.subr.mxu0 0.0
    %353 = vmatpush1.msra.mxu0 0.0
    %354 = vmatprep.subr.mxu0 0.0
    %355 = vmatpush1.msra.mxu0 0.0
    %356 = vmatprep.subr.mxu0 0.0
    %357 = vmatpush1.msra.mxu0 0.0
    %358 = vmatprep.subr.mxu0 0.0
    %359 = vmatpush1.msra.mxu0 0.0
    %360 = vmatprep.subr.mxu0 0.0
    %361 = vmatpush1.msra.mxu0 0.0
    %362 = vmatprep.subr.mxu0 0.0
    %363 = vmatpush1.msra.mxu0 0.0
    %364 = vmatprep.subr.mxu0 0.0
    %365 = vmatpush1.msra.mxu0 0.0
    %366 = vmatprep.subr.mxu0 0.0
    %367 = vmatpush1.msra.mxu0 0.0
    %368 = vmatprep.subr.mxu0 0.0
    %369 = vmatpush1.msra.mxu0 0.0
    %370 = vmatprep.subr.mxu0 0.0
    %371 = vmatpush1.msra.mxu0 0.0
    %372 = vmatprep.subr.mxu0 0.0
    %373 = vmatpush1.msra.mxu0 0.0
    %374 = vmatprep.subr.mxu0 0.0
    %375 = vmatpush1.msra.mxu0 0.0
    %376 = vmatprep.subr.mxu0 0.0
    %377 = vmatpush1.msra.mxu0 0.0
    %378 = vmatprep.subr.mxu0 0.0
    %379 = vmatpush1.msra.mxu0 0.0
    %380 = vmatprep.subr.mxu0 0.0
    %381 = vmatpush1.msra.mxu0 0.0
    %382 = vmatprep.subr.mxu0 0.0
    %383 = vmatpush1.msra.mxu0 0.0
    %384 = vmatprep.subr.mxu0 0.0
    %385 = vmatpush1.msra.mxu0 0.0
    %386 = vmatprep.subr.mxu0 0.0
    %387 = vmatpush1.msra.mxu0 0.0
    %388 = vmatprep.mubr.f32.mxu0 0.0
    %389 = vmatmul.mubr.f32.gmra.mrb[0].mxu0 %v71
    %v390 = vpop.f32.mrb[0].mxu0
    %v391 = vadd.f32 %v54, %v390
    %v392 = vpop.f32.mrb[0].mxu0
    %v393 = vadd.f32 %v54, %v392
    %394 = vmatprep.mubr.f32.mxu0 0.0
    %395 = vmatmul.mubr.f32.gmra.mrb[0].mxu0 %v74
    %v396 = vpop.f32.mrb[0].mxu0
    %v397 = vadd.f32 %v59, %v396
    %v398 = vpop.f32.mrb[0].mxu0
    %v399 = vadd.f32 %v59, %v398
    %400 = vdwg.mxu0
    %v401 = vmax.f32 %v160, 0.0
    %v402 = vmax.f32 %v162, 0.0
    %v403 = vmax.f32 %v237, 0.0
    %v404 = vmax.f32 %v239, 0.0
    %v405 = vmax.f32 %v314, 0.0
    %v406 = vmax.f32 %v316, 0.0
    %v407 = vmax.f32 %v391, 0.0
    %v408 = vmax.f32 %v393, 0.0
    %v409 = vmax.f32 %v166, 0.0
    %v410 = vmax.f32 %v168, 0.0
    %v411 = vmax.f32 %v243, 0.0
    %v412 = vmax.f32 %v245, 0.0
    %v413 = vmax.f32 %v320, 0.0
    %v414 = vmax.f32 %v322, 0.0
    %v415 = vmax.f32 %v397, 0.0
    %v416 = vmax.f32 %v399, 0.0
    %v417 = vld [vmem:[%s4] sm:$0xff]
    %v418 = vld [vmem:[%s4 + $0x8] sm:$0xff]
    %v419 = vld [vmem:[%s4 + $0x10] sm:$0xff]
    %v420 = vld [vmem:[%s4 + $0x18] sm:$0xff]
    %v421 = vld [vmem:[%s6] sm:$0xff]
    %v422 = vld [vmem:[%s6 + $0x8] sm:$0xff]
    %v423 = vld [vmem:[%s6 + $0x10] sm:$0xff]
    %v424 = vld [vmem:[%s6 + $0x18] sm:$0xff]
    %426 = vset.pattern.permute.xlu0 0
    %427 = vperm.xlu0 %426, %v421
    %v428 = vpop.permute.xlu0 %427
    %431 = vset.pattern.permute.xlu0 0
    %432 = vperm.xlu0 %431, %v422
    %v433 = vpop.permute.xlu0 %432
    %436 = vset.pattern.permute.xlu0 0
    %437 = vperm.xlu0 %436, %v423
    %v438 = vpop.permute.xlu0 %437
    %441 = vset.pattern.permute.xlu0 0
    %442 = vperm.xlu0 %441, %v424
    %v443 = vpop.permute.xlu0 %442
    %vm445 = vcmask 130048
    %v447 = vsel %vm445, %v417, 0
    %v450 = vsel %vm445, %v418, 0
    %v453 = vsel %vm445, %v419, 0
    %v456 = vsel %vm445, %v420, 0
    %458 = vmatprep.subr.mxu0 %v402
    %459 = vmatpush1.msra.mxu0 %v401
    %460 = vmatprep.subr.mxu0 %v410
    %461 = vmatpush1.msra.mxu0 %v409
    %462 = vmatprep.subr.mxu0 0.0
    %463 = vmatpush1.msra.mxu0 0.0
    %464 = vmatprep.subr.mxu0 0.0
    %465 = vmatpush1.msra.mxu0 0.0
    %466 = vmatprep.subr.mxu0 0.0
    %467 = vmatpush1.msra.mxu0 0.0
    %468 = vmatprep.subr.mxu0 0.0
    %469 = vmatpush1.msra.mxu0 0.0
    %470 = vmatprep.subr.mxu0 0.0
    %471 = vmatpush1.msra.mxu0 0.0
    %472 = vmatprep.subr.mxu0 0.0
    %473 = vmatpush1.msra.mxu0 0.0
    %474 = vmatprep.subr.mxu0 0.0
    %475 = vmatpush1.msra.mxu0 0.0
    %476 = vmatprep.subr.mxu0 0.0
    %477 = vmatpush1.msra.mxu0 0.0
    %478 = vmatprep.subr.mxu0 0.0
    %479 = vmatpush1.msra.mxu0 0.0
    %480 = vmatprep.subr.mxu0 0.0
    %481 = vmatpush1.msra.mxu0 0.0
    %482 = vmatprep.subr.mxu0 0.0
    %483 = vmatpush1.msra.mxu0 0.0
    %484 = vmatprep.subr.mxu0 0.0
    %485 = vmatpush1.msra.mxu0 0.0
    %486 = vmatprep.subr.mxu0 0.0
    %487 = vmatpush1.msra.mxu0 0.0
    %488 = vmatprep.subr.mxu0 0.0
    %489 = vmatpush1.msra.mxu0 0.0
    %490 = vmatprep.subr.mxu0 0.0
    %491 = vmatpush1.msra.mxu0 0.0
    %492 = vmatprep.subr.mxu0 0.0
    %493 = vmatpush1.msra.mxu0 0.0
    %494 = vmatprep.subr.mxu0 0.0
    %495 = vmatpush1.msra.mxu0 0.0
    %496 = vmatprep.subr.mxu0 0.0
    %497 = vmatpush1.msra.mxu0 0.0
    %498 = vmatprep.subr.mxu0 0.0
    %499 = vmatpush1.msra.mxu0 0.0
    %500 = vmatprep.subr.mxu0 0.0
    %501 = vmatpush1.msra.mxu0 0.0
    %502 = vmatprep.subr.mxu0 0.0
    %503 = vmatpush1.msra.mxu0 0.0
    %504 = vmatprep.subr.mxu0 0.0
    %505 = vmatpush1.msra.mxu0 0.0
    %506 = vmatprep.subr.mxu0 0.0
    %507 = vmatpush1.msra.mxu0 0.0
    %508 = vmatprep.subr.mxu0 0.0
    %509 = vmatpush1.msra.mxu0 0.0
    %510 = vmatprep.subr.mxu0 0.0
    %511 = vmatpush1.msra.mxu0 0.0
    %512 = vmatprep.subr.mxu0 0.0
    %513 = vmatpush1.msra.mxu0 0.0
    %514 = vmatprep.subr.mxu0 0.0
    %515 = vmatpush1.msra.mxu0 0.0
    %516 = vmatprep.subr.mxu0 0.0
    %517 = vmatpush1.msra.mxu0 0.0
    %518 = vmatprep.subr.mxu0 0.0
    %519 = vmatpush1.msra.mxu0 0.0
    %520 = vmatprep.subr.mxu0 0.0
    %521 = vmatpush1.msra.mxu0 0.0
    %522 = vmatprep.mubr.f32.mxu0 0.0
    %523 = vmatmul.mubr.f32.gmra.mrb[0].mxu0 %v447
    %v524 = vpop.f32.mrb[0].mxu0
    %v525 = vadd.f32 %v428, %v524
    %v526 = vpop.f32.mrb[0].mxu0
    %v527 = vadd.f32 %v428, %v526
    %528 = vmatprep.mubr.f32.mxu0 0.0
    %529 = vmatmul.mubr.f32.gmra.mrb[0].mxu0 %v450
    %v530 = vpop.f32.mrb[0].mxu0
    %v531 = vadd.f32 %v433, %v530
    %v532 = vpop.f32.mrb[0].mxu0
    %v533 = vadd.f32 %v433, %v532
    %534 = vmatprep.mubr.f32.mxu0 0.0
    %535 = vmatmul.mubr.f32.gmra.mrb[0].mxu0 %v453
    %v536 = vpop.f32.mrb[0].mxu0
    %v537 = vadd.f32 %v438, %v536
    %v538 = vpop.f32.mrb[0].mxu0
    %v539 = vadd.f32 %v438, %v538
    %540 = vmatprep.mubr.f32.mxu0 0.0
    %541 = vmatmul.mubr.f32.gmra.mrb[0].mxu0 %v456
    %v542 = vpop.f32.mrb[0].mxu0
    %v543 = vadd.f32 %v443, %v542
    %v544 = vpop.f32.mrb[0].mxu0
    %v545 = vadd.f32 %v443, %v544
    %546 = vdwg.mxu0
    %547 = vmatprep.subr.mxu0 %v404
    %548 = vmatpush1.msra.mxu0 %v403
    %549 = vmatprep.subr.mxu0 %v412
    %550 = vmatpush1.msra.mxu0 %v411
    %551 = vmatprep.subr.mxu0 0.0
    %552 = vmatpush1.msra.mxu0 0.0
    %553 = vmatprep.subr.mxu0 0.0
    %554 = vmatpush1.msra.mxu0 0.0
    %555 = vmatprep.subr.mxu0 0.0
    %556 = vmatpush1.msra.mxu0 0.0
    %557 = vmatprep.subr.mxu0 0.0
    %558 = vmatpush1.msra.mxu0 0.0
    %559 = vmatprep.subr.mxu0 0.0
    %560 = vmatpush1.msra.mxu0 0.0
    %561 = vmatprep.subr.mxu0 0.0
    %562 = vmatpush1.msra.mxu0 0.0
    %563 = vmatprep.subr.mxu0 0.0
    %564 = vmatpush1.msra.mxu0 0.0
    %565 = vmatprep.subr.mxu0 0.0
    %566 = vmatpush1.msra.mxu0 0.0
    %567 = vmatprep.subr.mxu0 0.0
    %568 = vmatpush1.msra.mxu0 0.0
    %569 = vmatprep.subr.mxu0 0.0
    %570 = vmatpush1.msra.mxu0 0.0
    %571 = vmatprep.subr.mxu0 0.0
    %572 = vmatpush1.msra.mxu0 0.0
    %573 = vmatprep.subr.mxu0 0.0
    %574 = vmatpush1.msra.mxu0 0.0
    %575 = vmatprep.subr.mxu0 0.0
    %576 = vmatpush1.msra.mxu0 0.0
    %577 = vmatprep.subr.mxu0 0.0
    %578 = vmatpush1.msra.mxu0 0.0
    %579 = vmatprep.subr.mxu0 0.0
    %580 = vmatpush1.msra.mxu0 0.0
    %581 = vmatprep.subr.mxu0 0.0
    %582 = vmatpush1.msra.mxu0 0.0
    %583 = vmatprep.subr.mxu0 0.0
    %584 = vmatpush1.msra.mxu0 0.0
    %585 = vmatprep.subr.mxu0 0.0
    %586 = vmatpush1.msra.mxu0 0.0
    %587 = vmatprep.subr.mxu0 0.0
    %588 = vmatpush1.msra.mxu0 0.0
    %589 = vmatprep.subr.mxu0 0.0
    %590 = vmatpush1.msra.mxu0 0.0
    %591 = vmatprep.subr.mxu0 0.0
    %592 = vmatpush1.msra.mxu0 0.0
    %593 = vmatprep.subr.mxu0 0.0
    %594 = vmatpush1.msra.mxu0 0.0
    %595 = vmatprep.subr.mxu0 0.0
    %596 = vmatpush1.msra.mxu0 0.0
    %597 = vmatprep.subr.mxu0 0.0
    %598 = vmatpush1.msra.mxu0 0.0
    %599 = vmatprep.subr.mxu0 0.0
    %600 = vmatpush1.msra.mxu0 0.0
    %601 = vmatprep.subr.mxu0 0.0
    %602 = vmatpush1.msra.mxu0 0.0
    %603 = vmatprep.subr.mxu0 0.0
    %604 = vmatpush1.msra.mxu0 0.0
    %605 = vmatprep.subr.mxu0 0.0
    %606 = vmatpush1.msra.mxu0 0.0
    %607 = vmatprep.subr.mxu0 0.0
    %608 = vmatpush1.msra.mxu0 0.0
    %609 = vmatprep.subr.mxu0 0.0
    %610 = vmatpush1.msra.mxu0 0.0
    %611 = vmatprep.mubr.f32.mxu0 0.0
    %612 = vmatmul.mubr.f32.gmra.mrb[0].mxu0 %v447
    %v613 = vpop.f32.mrb[0].mxu0
    %v614 = vadd.f32 %v428, %v613
    %v615 = vpop.f32.mrb[0].mxu0
    %v616 = vadd.f32 %v428, %v615
    %617 = vmatprep.mubr.f32.mxu0 0.0
    %618 = vmatmul.mubr.f32.gmra.mrb[0].mxu0 %v450
    %v619 = vpop.f32.mrb[0].mxu0
    %v620 = vadd.f32 %v433, %v619
    %v621 = vpop.f32.mrb[0].mxu0
    %v622 = vadd.f32 %v433, %v621
    %623 = vmatprep.mubr.f32.mxu0 0.0
    %624 = vmatmul.mubr.f32.gmra.mrb[0].mxu0 %v453
    %v625 = vpop.f32.mrb[0].mxu0
    %v626 = vadd.f32 %v438, %v625
    %v627 = vpop.f32.mrb[0].mxu0
    %v628 = vadd.f32 %v438, %v627
    %629 = vmatprep.mubr.f32.mxu0 0.0
    %630 = vmatmul.mubr.f32.gmra.mrb[0].mxu0 %v456
    %v631 = vpop.f32.mrb[0].mxu0
    %v632 = vadd.f32 %v443, %v631
    %v633 = vpop.f32.mrb[0].mxu0
    %v634 = vadd.f32 %v443, %v633
    %635 = vdwg.mxu0
    %636 = vmatprep.subr.mxu0 %v406
    %637 = vmatpush1.msra.mxu0 %v405
    %638 = vmatprep.subr.mxu0 %v414
    %639 = vmatpush1.msra.mxu0 %v413
    %640 = vmatprep.subr.mxu0 0.0
    %641 = vmatpush1.msra.mxu0 0.0
    %642 = vmatprep.subr.mxu0 0.0
    %643 = vmatpush1.msra.mxu0 0.0
    %644 = vmatprep.subr.mxu0 0.0
    %645 = vmatpush1.msra.mxu0 0.0
    %646 = vmatprep.subr.mxu0 0.0
    %647 = vmatpush1.msra.mxu0 0.0
    %648 = vmatprep.subr.mxu0 0.0
    %649 = vmatpush1.msra.mxu0 0.0
    %650 = vmatprep.subr.mxu0 0.0
    %651 = vmatpush1.msra.mxu0 0.0
    %652 = vmatprep.subr.mxu0 0.0
    %653 = vmatpush1.msra.mxu0 0.0
    %654 = vmatprep.subr.mxu0 0.0
    %655 = vmatpush1.msra.mxu0 0.0
    %656 = vmatprep.subr.mxu0 0.0
    %657 = vmatpush1.msra.mxu0 0.0
    %658 = vmatprep.subr.mxu0 0.0
    %659 = vmatpush1.msra.mxu0 0.0
    %660 = vmatprep.subr.mxu0 0.0
    %661 = vmatpush1.msra.mxu0 0.0
    %662 = vmatprep.subr.mxu0 0.0
    %663 = vmatpush1.msra.mxu0 0.0
    %664 = vmatprep.subr.mxu0 0.0
    %665 = vmatpush1.msra.mxu0 0.0
    %666 = vmatprep.subr.mxu0 0.0
    %667 = vmatpush1.msra.mxu0 0.0
    %668 = vmatprep.subr.mxu0 0.0
    %669 = vmatpush1.msra.mxu0 0.0
    %670 = vmatprep.subr.mxu0 0.0
    %671 = vmatpush1.msra.mxu0 0.0
    %672 = vmatprep.subr.mxu0 0.0
    %673 = vmatpush1.msra.mxu0 0.0
    %674 = vmatprep.subr.mxu0 0.0
    %675 = vmatpush1.msra.mxu0 0.0
    %676 = vmatprep.subr.mxu0 0.0
    %677 = vmatpush1.msra.mxu0 0.0
    %678 = vmatprep.subr.mxu0 0.0
    %679 = vmatpush1.msra.mxu0 0.0
    %680 = vmatprep.subr.mxu0 0.0
    %681 = vmatpush1.msra.mxu0 0.0
    %682 = vmatprep.subr.mxu0 0.0
    %683 = vmatpush1.msra.mxu0 0.0
    %684 = vmatprep.subr.mxu0 0.0
    %685 = vmatpush1.msra.mxu0 0.0
    %686 = vmatprep.subr.mxu0 0.0
    %687 = vmatpush1.msra.mxu0 0.0
    %688 = vmatprep.subr.mxu0 0.0
    %689 = vmatpush1.msra.mxu0 0.0
    %690 = vmatprep.subr.mxu0 0.0
    %691 = vmatpush1.msra.mxu0 0.0
    %692 = vmatprep.subr.mxu0 0.0
    %693 = vmatpush1.msra.mxu0 0.0
    %694 = vmatprep.subr.mxu0 0.0
    %695 = vmatpush1.msra.mxu0 0.0
    %696 = vmatprep.subr.mxu0 0.0
    %697 = vmatpush1.msra.mxu0 0.0
    %698 = vmatprep.subr.mxu0 0.0
    %699 = vmatpush1.msra.mxu0 0.0
    %700 = vmatprep.mubr.f32.mxu0 0.0
    %701 = vmatmul.mubr.f32.gmra.mrb[0].mxu0 %v447
    %v702 = vpop.f32.mrb[0].mxu0
    %v703 = vadd.f32 %v428, %v702
    %v704 = vpop.f32.mrb[0].mxu0
    %v705 = vadd.f32 %v428, %v704
    %706 = vmatprep.mubr.f32.mxu0 0.0
    %707 = vmatmul.mubr.f32.gmra.mrb[0].mxu0 %v450
    %v708 = vpop.f32.mrb[0].mxu0
    %v709 = vadd.f32 %v433, %v708
    %v710 = vpop.f32.mrb[0].mxu0
    %v711 = vadd.f32 %v433, %v710
    %712 = vmatprep.mubr.f32.mxu0 0.0
    %713 = vmatmul.mubr.f32.gmra.mrb[0].mxu0 %v453
    %v714 = vpop.f32.mrb[0].mxu0
    %v715 = vadd.f32 %v438, %v714
    %v716 = vpop.f32.mrb[0].mxu0
    %v717 = vadd.f32 %v438, %v716
    %718 = vmatprep.mubr.f32.mxu0 0.0
    %719 = vmatmul.mubr.f32.gmra.mrb[0].mxu0 %v456
    %v720 = vpop.f32.mrb[0].mxu0
    %v721 = vadd.f32 %v443, %v720
    %v722 = vpop.f32.mrb[0].mxu0
    %v723 = vadd.f32 %v443, %v722
    %724 = vdwg.mxu0
    %725 = vmatprep.subr.mxu0 %v408
    %726 = vmatpush1.msra.mxu0 %v407
    %727 = vmatprep.subr.mxu0 %v416
    %728 = vmatpush1.msra.mxu0 %v415
    %729 = vmatprep.subr.mxu0 0.0
    %730 = vmatpush1.msra.mxu0 0.0
    %731 = vmatprep.subr.mxu0 0.0
    %732 = vmatpush1.msra.mxu0 0.0
    %733 = vmatprep.subr.mxu0 0.0
    %734 = vmatpush1.msra.mxu0 0.0
    %735 = vmatprep.subr.mxu0 0.0
    %736 = vmatpush1.msra.mxu0 0.0
    %737 = vmatprep.subr.mxu0 0.0
    %738 = vmatpush1.msra.mxu0 0.0
    %739 = vmatprep.subr.mxu0 0.0
    %740 = vmatpush1.msra.mxu0 0.0
    %741 = vmatprep.subr.mxu0 0.0
    %742 = vmatpush1.msra.mxu0 0.0
    %743 = vmatprep.subr.mxu0 0.0
    %744 = vmatpush1.msra.mxu0 0.0
    %745 = vmatprep.subr.mxu0 0.0
    %746 = vmatpush1.msra.mxu0 0.0
    %747 = vmatprep.subr.mxu0 0.0
    %748 = vmatpush1.msra.mxu0 0.0
    %749 = vmatprep.subr.mxu0 0.0
    %750 = vmatpush1.msra.mxu0 0.0
    %751 = vmatprep.subr.mxu0 0.0
    %752 = vmatpush1.msra.mxu0 0.0
    %753 = vmatprep.subr.mxu0 0.0
    %754 = vmatpush1.msra.mxu0 0.0
    %755 = vmatprep.subr.mxu0 0.0
    %756 = vmatpush1.msra.mxu0 0.0
    %757 = vmatprep.subr.mxu0 0.0
    %758 = vmatpush1.msra.mxu0 0.0
    %759 = vmatprep.subr.mxu0 0.0
    %760 = vmatpush1.msra.mxu0 0.0
    %761 = vmatprep.subr.mxu0 0.0
    %762 = vmatpush1.msra.mxu0 0.0
    %763 = vmatprep.subr.mxu0 0.0
    %764 = vmatpush1.msra.mxu0 0.0
    %765 = vmatprep.subr.mxu0 0.0
    %766 = vmatpush1.msra.mxu0 0.0
    %767 = vmatprep.subr.mxu0 0.0
    %768 = vmatpush1.msra.mxu0 0.0
    %769 = vmatprep.subr.mxu0 0.0
    %770 = vmatpush1.msra.mxu0 0.0
    %771 = vmatprep.subr.mxu0 0.0
    %772 = vmatpush1.msra.mxu0 0.0
    %773 = vmatprep.subr.mxu0 0.0
    %774 = vmatpush1.msra.mxu0 0.0
    %775 = vmatprep.subr.mxu0 0.0
    %776 = vmatpush1.msra.mxu0 0.0
    %777 = vmatprep.subr.mxu0 0.0
    %778 = vmatpush1.msra.mxu0 0.0
    %779 = vmatprep.subr.mxu0 0.0
    %780 = vmatpush1.msra.mxu0 0.0
    %781 = vmatprep.subr.mxu0 0.0
    %782 = vmatpush1.msra.mxu0 0.0
    %783 = vmatprep.subr.mxu0 0.0
    %784 = vmatpush1.msra.mxu0 0.0
    %785 = vmatprep.subr.mxu0 0.0
    %786 = vmatpush1.msra.mxu0 0.0
    %787 = vmatprep.subr.mxu0 0.0
    %788 = vmatpush1.msra.mxu0 0.0
    %789 = vmatprep.mubr.f32.mxu0 0.0
    %790 = vmatmul.mubr.f32.gmra.mrb[0].mxu0 %v447
    %v791 = vpop.f32.mrb[0].mxu0
    %v792 = vadd.f32 %v428, %v791
    %v793 = vpop.f32.mrb[0].mxu0
    %v794 = vadd.f32 %v428, %v793
    %795 = vmatprep.mubr.f32.mxu0 0.0
    %796 = vmatmul.mubr.f32.gmra.mrb[0].mxu0 %v450
    %v797 = vpop.f32.mrb[0].mxu0
    %v798 = vadd.f32 %v433, %v797
    %v799 = vpop.f32.mrb[0].mxu0
    %v800 = vadd.f32 %v433, %v799
    %801 = vmatprep.mubr.f32.mxu0 0.0
    %802 = vmatmul.mubr.f32.gmra.mrb[0].mxu0 %v453
    %v803 = vpop.f32.mrb[0].mxu0
    %v804 = vadd.f32 %v438, %v803
    %v805 = vpop.f32.mrb[0].mxu0
    %v806 = vadd.f32 %v438, %v805
    %807 = vmatprep.mubr.f32.mxu0 0.0
    %808 = vmatmul.mubr.f32.gmra.mrb[0].mxu0 %v456
    %v809 = vpop.f32.mrb[0].mxu0
    %v810 = vadd.f32 %v443, %v809
    %v811 = vpop.f32.mrb[0].mxu0
    %v812 = vadd.f32 %v443, %v811
    %813 = vdwg.mxu0
    %814 = vst [vmem:[#allocation2] sm:$0xff] %v525
    %815 = vst [vmem:[#allocation2 + $0x8] sm:$0xff] %v531
    %816 = vst [vmem:[#allocation2 + $0x10] sm:$0xff] %v537
    %817 = vst [vmem:[#allocation2 + $0x18] sm:$0xff] %v543
    %s818 = scalar_lea.vmem [#allocation2], 32
    %819 = vst [vmem:[%s818] sm:$0xff] %v527
    %820 = vst [vmem:[%s818 + $0x8] sm:$0xff] %v533
    %821 = vst [vmem:[%s818 + $0x10] sm:$0xff] %v539
    %822 = vst [vmem:[%s818 + $0x18] sm:$0xff] %v545
    %s823 = scalar_lea.vmem [#allocation2], 64
    %824 = vst [vmem:[%s823] sm:$0xff] %v614
    %825 = vst [vmem:[%s823 + $0x8] sm:$0xff] %v620
    %826 = vst [vmem:[%s823 + $0x10] sm:$0xff] %v626
    %827 = vst [vmem:[%s823 + $0x18] sm:$0xff] %v632
    %s828 = scalar_lea.vmem [#allocation2], 96
    %829 = vst [vmem:[%s828] sm:$0xff] %v616
    %830 = vst [vmem:[%s828 + $0x8] sm:$0xff] %v622
    %831 = vst [vmem:[%s828 + $0x10] sm:$0xff] %v628
    %832 = vst [vmem:[%s828 + $0x18] sm:$0xff] %v634
    %s833 = scalar_lea.vmem [#allocation2], 128
    %834 = vst [vmem:[%s833] sm:$0xff] %v703
    %835 = vst [vmem:[%s833 + $0x8] sm:$0xff] %v709
    %836 = vst [vmem:[%s833 + $0x10] sm:$0xff] %v715
    %837 = vst [vmem:[%s833 + $0x18] sm:$0xff] %v721
    %s838 = scalar_lea.vmem [#allocation2], 160
    %839 = vst [vmem:[%s838] sm:$0xff] %v705
    %840 = vst [vmem:[%s838 + $0x8] sm:$0xff] %v711
    %841 = vst [vmem:[%s838 + $0x10] sm:$0xff] %v717
    %842 = vst [vmem:[%s838 + $0x18] sm:$0xff] %v723
    %s843 = scalar_lea.vmem [#allocation2], 192
    %844 = vst [vmem:[%s843] sm:$0xff] %v792
    %845 = vst [vmem:[%s843 + $0x8] sm:$0xff] %v798
    %846 = vst [vmem:[%s843 + $0x10] sm:$0xff] %v804
    %847 = vst [vmem:[%s843 + $0x18] sm:$0xff] %v810
    %s848 = scalar_lea.vmem [#allocation2], 224
    %849 = vst [vmem:[%s848] sm:$0xff] %v794
    %850 = vst [vmem:[%s848 + $0x8] sm:$0xff] %v800
    %851 = vst [vmem:[%s848 + $0x10] sm:$0xff] %v806
    %852 = vst [vmem:[%s848 + $0x18] sm:$0xff] %v812
    %v853 = vld [vmem:[%s5] sm:$0xff]
    %v854 = vld [vmem:[%s5 + $0x8] sm:$0xff]
    %v855 = vld [vmem:[%s5 + $0x10] sm:$0xff]
    %v856 = vld [vmem:[%s5 + $0x18] sm:$0xff]
    %858 = vset.pattern.permute.xlu0 0
    %859 = vperm.xlu0 %858, %v853
    %v860 = vpop.permute.xlu0 %859
    %863 = vset.pattern.permute.xlu0 0
    %864 = vperm.xlu0 %863, %v854
    %v865 = vpop.permute.xlu0 %864
    %868 = vset.pattern.permute.xlu0 0
    %869 = vperm.xlu0 %868, %v855
    %v870 = vpop.permute.xlu0 %869
    %873 = vset.pattern.permute.xlu0 0
    %874 = vperm.xlu0 %873, %v856
    %v875 = vpop.permute.xlu0 %874
    %v877 = vmul.f32 %v860, 0.0
    %v878 = vmul.f32 %v865, 0.0
    %v879 = vmul.f32 %v870, 0.0
    %v880 = vmul.f32 %v875, 0.0
    %881 = vset.pattern.permute.xlu0 1
    %882 = vperm.xlu0 %881, %v853
    %v883 = vpop.permute.xlu0 %882
    %885 = vset.pattern.permute.xlu0 1
    %886 = vperm.xlu0 %885, %v854
    %v887 = vpop.permute.xlu0 %886
    %889 = vset.pattern.permute.xlu0 1
    %890 = vperm.xlu0 %889, %v855
    %v891 = vpop.permute.xlu0 %890
    %893 = vset.pattern.permute.xlu0 1
    %894 = vperm.xlu0 %893, %v856
    %v895 = vpop.permute.xlu0 %894
    %v897 = vmul.f32 %v883, 0.0
    %v898 = vmul.f32 %v887, 0.0
    %v899 = vmul.f32 %v891, 0.0
    %v900 = vmul.f32 %v895, 0.0
    %v901 = vadd.f32 %v877, %v897
    %v902 = vadd.f32 %v878, %v898
    %v903 = vadd.f32 %v879, %v899
    %v904 = vadd.f32 %v880, %v900
    %905 = vset.pattern.permute.xlu0 2
    %906 = vperm.xlu0 %905, %v853
    %v907 = vpop.permute.xlu0 %906
    %909 = vset.pattern.permute.xlu0 2
    %910 = vperm.xlu0 %909, %v854
    %v911 = vpop.permute.xlu0 %910
    %913 = vset.pattern.permute.xlu0 2
    %914 = vperm.xlu0 %913, %v855
    %v915 = vpop.permute.xlu0 %914
    %917 = vset.pattern.permute.xlu0 2
    %918 = vperm.xlu0 %917, %v856
    %v919 = vpop.permute.xlu0 %918
    %v921 = vmul.f32 %v907, 0.0
    %v922 = vmul.f32 %v911, 0.0
    %v923 = vmul.f32 %v915, 0.0
    %v924 = vmul.f32 %v919, 0.0
    %v925 = vadd.f32 %v901, %v921
    %v926 = vadd.f32 %v902, %v922
    %v927 = vadd.f32 %v903, %v923
    %v928 = vadd.f32 %v904, %v924
    %929 = vset.pattern.permute.xlu0 3
    %930 = vperm.xlu0 %929, %v853
    %v931 = vpop.permute.xlu0 %930
    %933 = vset.pattern.permute.xlu0 3
    %934 = vperm.xlu0 %933, %v854
    %v935 = vpop.permute.xlu0 %934
    %937 = vset.pattern.permute.xlu0 3
    %938 = vperm.xlu0 %937, %v855
    %v939 = vpop.permute.xlu0 %938
    %941 = vset.pattern.permute.xlu0 3
    %942 = vperm.xlu0 %941, %v856
    %v943 = vpop.permute.xlu0 %942
    %v945 = vmul.f32 %v931, 0.0
    %v946 = vmul.f32 %v935, 0.0
    %v947 = vmul.f32 %v939, 0.0
    %v948 = vmul.f32 %v943, 0.0
    %v949 = vadd.f32 %v925, %v945
    %v950 = vadd.f32 %v926, %v946
    %v951 = vadd.f32 %v927, %v947
    %v952 = vadd.f32 %v928, %v948
    %953 = vset.pattern.permute.xlu0 4
    %954 = vperm.xlu0 %953, %v853
    %v955 = vpop.permute.xlu0 %954
    %957 = vset.pattern.permute.xlu0 4
    %958 = vperm.xlu0 %957, %v854
    %v959 = vpop.permute.xlu0 %958
    %961 = vset.pattern.permute.xlu0 4
    %962 = vperm.xlu0 %961, %v855
    %v963 = vpop.permute.xlu0 %962
    %965 = vset.pattern.permute.xlu0 4
    %966 = vperm.xlu0 %965, %v856
    %v967 = vpop.permute.xlu0 %966
    %v969 = vmul.f32 %v955, 0.0
    %v970 = vmul.f32 %v959, 0.0
    %v971 = vmul.f32 %v963, 0.0
    %v972 = vmul.f32 %v967, 0.0
    %v973 = vadd.f32 %v949, %v969
    %v974 = vadd.f32 %v950, %v970
    %v975 = vadd.f32 %v951, %v971
    %v976 = vadd.f32 %v952, %v972
    %v977 = vld [vmem:[#allocation2] sm:$0xff]
    %v978 = vld [vmem:[#allocation2 + $0x8] sm:$0xff]
    %v979 = vld [vmem:[#allocation2 + $0x10] sm:$0xff]
    %v980 = vld [vmem:[#allocation2 + $0x18] sm:$0xff]
    %v981 = vadd.f32 %v977, %v973
    %v982 = vadd.f32 %v978, %v974
    %v983 = vadd.f32 %v979, %v975
    %v984 = vadd.f32 %v980, %v976
    %v985 = vxor.u32 %v981, 2147483648
    %v986 = vxor.u32 %v982, 2147483648
    %v987 = vxor.u32 %v983, 2147483648
    %v988 = vmul.f32 %v985, 1.442695
    %v989 = vpow.pop %v988
    %v990 = vmul.f32 %v986, 1.442695
    %v991 = vpow.pop %v990
    %v992 = vmul.f32 %v987, 1.442695
    %v993 = vpow.pop %v992
    %v994 = vadd.f32 %v989, 1.0
    %v995 = vadd.f32 %v991, 1.0
    %v996 = vadd.f32 %v993, 1.0
    %v997 = vrcp.pop %v994
    %v998 = vmul.f32 1.0, %v997
    %v999 = vrcp.pop %v995
    %v1000 = vmul.f32 1.0, %v999
    %v1001 = vrcp.pop %v996
    %v1002 = vmul.f32 1.0, %v1001
    %v1003 = vtanh.pop %v984
    %v1004 = vmul.f32 %v1000, 0.0
    %v1005 = vmul.f32 %v998, %v1003
    %v1006 = vadd.f32 %v1004, %v1005
    %v1007 = vtanh.pop %v1006
    %v1008 = vmul.f32 %v1002, %v1007
    %v1009 = vlaneseq
    %v1010 = vshrl.u32 %v1009, 7
    %v1011 = vsub.s32 0, %v1010
    %v1012 = vrot.slane %v1008, %v1011
    %v1013 = vmul.f32 %v860, %v1012
    %v1014 = vmul.f32 %v865, %v1012
    %v1015 = vmul.f32 %v870, %v1012
    %v1016 = vmul.f32 %v875, %v1012
    %v1017 = vlaneseq
    %v1018 = vshrl.u32 %v1017, 7
    %v1019 = vsub.s32 1, %v1018
    %v1020 = vrot.slane %v1008, %v1019
    %v1021 = vmul.f32 %v883, %v1020
    %v1022 = vmul.f32 %v887, %v1020
    %v1023 = vmul.f32 %v891, %v1020
    %v1024 = vmul.f32 %v895, %v1020
    %v1025 = vadd.f32 %v1013, %v1021
    %v1026 = vadd.f32 %v1014, %v1022
    %v1027 = vadd.f32 %v1015, %v1023
    %v1028 = vadd.f32 %v1016, %v1024
    %v1029 = vlaneseq
    %v1030 = vshrl.u32 %v1029, 7
    %v1031 = vsub.s32 2, %v1030
    %v1032 = vrot.slane %v1008, %v1031
    %v1033 = vmul.f32 %v907, %v1032
    %v1034 = vmul.f32 %v911, %v1032
    %v1035 = vmul.f32 %v915, %v1032
    %v1036 = vmul.f32 %v919, %v1032
    %v1037 = vadd.f32 %v1025, %v1033
    %v1038 = vadd.f32 %v1026, %v1034
    %v1039 = vadd.f32 %v1027, %v1035
    %v1040 = vadd.f32 %v1028, %v1036
    %v1041 = vlaneseq
    %v1042 = vshrl.u32 %v1041, 7
    %v1043 = vsub.s32 3, %v1042
    %v1044 = vrot.slane %v1008, %v1043
    %v1045 = vmul.f32 %v931, %v1044
    %v1046 = vmul.f32 %v935, %v1044
    %v1047 = vmul.f32 %v939, %v1044
    %v1048 = vmul.f32 %v943, %v1044
    %v1049 = vadd.f32 %v1037, %v1045
    %v1050 = vadd.f32 %v1038, %v1046
    %v1051 = vadd.f32 %v1039, %v1047
    %v1052 = vadd.f32 %v1040, %v1048
    %v1053 = vlaneseq
    %v1054 = vshrl.u32 %v1053, 7
    %v1055 = vsub.s32 4, %v1054
    %v1056 = vrot.slane %v1008, %v1055
    %v1057 = vmul.f32 %v955, %v1056
    %v1058 = vmul.f32 %v959, %v1056
    %v1059 = vmul.f32 %v963, %v1056
    %v1060 = vmul.f32 %v967, %v1056
    %v1061 = vadd.f32 %v1049, %v1057
    %v1062 = vadd.f32 %v1050, %v1058
    %v1063 = vadd.f32 %v1051, %v1059
    %v1064 = vadd.f32 %v1052, %v1060
    %v1065 = vld [vmem:[%s818] sm:$0xff]
    %v1066 = vld [vmem:[%s818 + $0x8] sm:$0xff]
    %v1067 = vld [vmem:[%s818 + $0x10] sm:$0xff]
    %v1068 = vld [vmem:[%s818 + $0x18] sm:$0xff]
    %v1069 = vadd.f32 %v1065, %v1061
    %v1070 = vadd.f32 %v1066, %v1062
    %v1071 = vadd.f32 %v1067, %v1063
    %v1072 = vadd.f32 %v1068, %v1064
    %v1073 = vxor.u32 %v1069, 2147483648
    %v1074 = vxor.u32 %v1070, 2147483648
    %v1075 = vxor.u32 %v1071, 2147483648
    %v1076 = vmul.f32 %v1073, 1.442695
    %v1077 = vpow.pop %v1076
    %v1078 = vmul.f32 %v1074, 1.442695
    %v1079 = vpow.pop %v1078
    %v1080 = vmul.f32 %v1075, 1.442695
    %v1081 = vpow.pop %v1080
    %v1082 = vadd.f32 %v1077, 1.0
    %v1083 = vadd.f32 %v1079, 1.0
    %v1084 = vadd.f32 %v1081, 1.0
    %v1085 = vrcp.pop %v1082
    %v1086 = vmul.f32 1.0, %v1085
    %v1087 = vrcp.pop %v1083
    %v1088 = vmul.f32 1.0, %v1087
    %v1089 = vrcp.pop %v1084
    %v1090 = vmul.f32 1.0, %v1089
    %v1091 = vtanh.pop %v1072
    %v1092 = vmul.f32 %v1088, %v1006
    %v1093 = vmul.f32 %v1086, %v1091
    %v1094 = vadd.f32 %v1092, %v1093
    %v1095 = vtanh.pop %v1094
    %v1096 = vmul.f32 %v1090, %v1095
    %v1097 = vlaneseq
    %v1098 = vshrl.u32 %v1097, 7
    %v1099 = vsub.s32 0, %v1098
    %v1100 = vrot.slane %v1096, %v1099
    %v1101 = vmul.f32 %v860, %v1100
    %v1102 = vmul.f32 %v865, %v1100
    %v1103 = vmul.f32 %v870, %v1100
    %v1104 = vmul.f32 %v875, %v1100
    %v1105 = vlaneseq
    %v1106 = vshrl.u32 %v1105, 7
    %v1107 = vsub.s32 1, %v1106
    %v1108 = vrot.slane %v1096, %v1107
    %v1109 = vmul.f32 %v883, %v1108
    %v1110 = vmul.f32 %v887, %v1108
    %v1111 = vmul.f32 %v891, %v1108
    %v1112 = vmul.f32 %v895, %v1108
    %v1113 = vadd.f32 %v1101, %v1109
    %v1114 = vadd.f32 %v1102, %v1110
    %v1115 = vadd.f32 %v1103, %v1111
    %v1116 = vadd.f32 %v1104, %v1112
    %v1117 = vlaneseq
    %v1118 = vshrl.u32 %v1117, 7
    %v1119 = vsub.s32 2, %v1118
    %v1120 = vrot.slane %v1096, %v1119
    %v1121 = vmul.f32 %v907, %v1120
    %v1122 = vmul.f32 %v911, %v1120
    %v1123 = vmul.f32 %v915, %v1120
    %v1124 = vmul.f32 %v919, %v1120
    %v1125 = vadd.f32 %v1113, %v1121
    %v1126 = vadd.f32 %v1114, %v1122
    %v1127 = vadd.f32 %v1115, %v1123
    %v1128 = vadd.f32 %v1116, %v1124
    %v1129 = vlaneseq
    %v1130 = vshrl.u32 %v1129, 7
    %v1131 = vsub.s32 3, %v1130
    %v1132 = vrot.slane %v1096, %v1131
    %v1133 = vmul.f32 %v931, %v1132
    %v1134 = vmul.f32 %v935, %v1132
    %v1135 = vmul.f32 %v939, %v1132
    %v1136 = vmul.f32 %v943, %v1132
    %v1137 = vadd.f32 %v1125, %v1133
    %v1138 = vadd.f32 %v1126, %v1134
    %v1139 = vadd.f32 %v1127, %v1135
    %v1140 = vadd.f32 %v1128, %v1136
    %v1141 = vlaneseq
    %v1142 = vshrl.u32 %v1141, 7
    %v1143 = vsub.s32 4, %v1142
    %v1144 = vrot.slane %v1096, %v1143
    %v1145 = vmul.f32 %v955, %v1144
    %v1146 = vmul.f32 %v959, %v1144
    %v1147 = vmul.f32 %v963, %v1144
    %v1148 = vmul.f32 %v967, %v1144
    %v1149 = vadd.f32 %v1137, %v1145
    %v1150 = vadd.f32 %v1138, %v1146
    %v1151 = vadd.f32 %v1139, %v1147
    %v1152 = vadd.f32 %v1140, %v1148
    %v1153 = vld [vmem:[%s823] sm:$0xff]
    %v1154 = vld [vmem:[%s823 + $0x8] sm:$0xff]
    %v1155 = vld [vmem:[%s823 + $0x10] sm:$0xff]
    %v1156 = vld [vmem:[%s823 + $0x18] sm:$0xff]
    %v1157 = vadd.f32 %v1153, %v1149
    %v1158 = vadd.f32 %v1154, %v1150
    %v1159 = vadd.f32 %v1155, %v1151
    %v1160 = vadd.f32 %v1156, %v1152
    %v1161 = vxor.u32 %v1157, 2147483648
    %v1162 = vxor.u32 %v1158, 2147483648
    %v1163 = vxor.u32 %v1159, 2147483648
    %v1164 = vmul.f32 %v1161, 1.442695
    %v1165 = vpow.pop %v1164
    %v1166 = vmul.f32 %v1162, 1.442695
    %v1167 = vpow.pop %v1166
    %v1168 = vmul.f32 %v1163, 1.442695
    %v1169 = vpow.pop %v1168
    %v1170 = vadd.f32 %v1165, 1.0
    %v1171 = vadd.f32 %v1167, 1.0
    %v1172 = vadd.f32 %v1169, 1.0
    %v1173 = vrcp.pop %v1170
    %v1174 = vmul.f32 1.0, %v1173
    %v1175 = vrcp.pop %v1171
    %v1176 = vmul.f32 1.0, %v1175
    %v1177 = vrcp.pop %v1172
    %v1178 = vmul.f32 1.0, %v1177
    %v1179 = vtanh.pop %v1160
    %v1180 = vmul.f32 %v1176, %v1094
    %v1181 = vmul.f32 %v1174, %v1179
    %v1182 = vadd.f32 %v1180, %v1181
    %v1183 = vtanh.pop %v1182
    %v1184 = vmul.f32 %v1178, %v1183
    %v1185 = vlaneseq
    %v1186 = vshrl.u32 %v1185, 7
    %v1187 = vsub.s32 0, %v1186
    %v1188 = vrot.slane %v1184, %v1187
    %v1189 = vmul.f32 %v860, %v1188
    %v1190 = vmul.f32 %v865, %v1188
    %v1191 = vmul.f32 %v870, %v1188
    %v1192 = vmul.f32 %v875, %v1188
    %v1193 = vlaneseq
    %v1194 = vshrl.u32 %v1193, 7
    %v1195 = vsub.s32 1, %v1194
    %v1196 = vrot.slane %v1184, %v1195
    %v1197 = vmul.f32 %v883, %v1196
    %v1198 = vmul.f32 %v887, %v1196
    %v1199 = vmul.f32 %v891, %v1196
    %v1200 = vmul.f32 %v895, %v1196
    %v1201 = vadd.f32 %v1189, %v1197
    %v1202 = vadd.f32 %v1190, %v1198
    %v1203 = vadd.f32 %v1191, %v1199
    %v1204 = vadd.f32 %v1192, %v1200
    %v1205 = vlaneseq
    %v1206 = vshrl.u32 %v1205, 7
    %v1207 = vsub.s32 2, %v1206
    %v1208 = vrot.slane %v1184, %v1207
    %v1209 = vmul.f32 %v907, %v1208
    %v1210 = vmul.f32 %v911, %v1208
    %v1211 = vmul.f32 %v915, %v1208
    %v1212 = vmul.f32 %v919, %v1208
    %v1213 = vadd.f32 %v1201, %v1209
    %v1214 = vadd.f32 %v1202, %v1210
    %v1215 = vadd.f32 %v1203, %v1211
    %v1216 = vadd.f32 %v1204, %v1212
    %v1217 = vlaneseq
    %v1218 = vshrl.u32 %v1217, 7
    %v1219 = vsub.s32 3, %v1218
    %v1220 = vrot.slane %v1184, %v1219
    %v1221 = vmul.f32 %v931, %v1220
    %v1222 = vmul.f32 %v935, %v1220
    %v1223 = vmul.f32 %v939, %v1220
    %v1224 = vmul.f32 %v943, %v1220
    %v1225 = vadd.f32 %v1213, %v1221
    %v1226 = vadd.f32 %v1214, %v1222
    %v1227 = vadd.f32 %v1215, %v1223
    %v1228 = vadd.f32 %v1216, %v1224
    %v1229 = vlaneseq
    %v1230 = vshrl.u32 %v1229, 7
    %v1231 = vsub.s32 4, %v1230
    %v1232 = vrot.slane %v1184, %v1231
    %v1233 = vmul.f32 %v955, %v1232
    %v1234 = vmul.f32 %v959, %v1232
    %v1235 = vmul.f32 %v963, %v1232
    %v1236 = vmul.f32 %v967, %v1232
    %v1237 = vadd.f32 %v1225, %v1233
    %v1238 = vadd.f32 %v1226, %v1234
    %v1239 = vadd.f32 %v1227, %v1235
    %v1240 = vadd.f32 %v1228, %v1236
    %v1241 = vld [vmem:[%s828] sm:$0xff]
    %v1242 = vld [vmem:[%s828 + $0x8] sm:$0xff]
    %v1243 = vld [vmem:[%s828 + $0x10] sm:$0xff]
    %v1244 = vld [vmem:[%s828 + $0x18] sm:$0xff]
    %v1245 = vadd.f32 %v1241, %v1237
    %v1246 = vadd.f32 %v1242, %v1238
    %v1247 = vadd.f32 %v1243, %v1239
    %v1248 = vadd.f32 %v1244, %v1240
    %v1249 = vxor.u32 %v1245, 2147483648
    %v1250 = vxor.u32 %v1246, 2147483648
    %v1251 = vxor.u32 %v1247, 2147483648
    %v1252 = vmul.f32 %v1249, 1.442695
    %v1253 = vpow.pop %v1252
    %v1254 = vmul.f32 %v1250, 1.442695
    %v1255 = vpow.pop %v1254
    %v1256 = vmul.f32 %v1251, 1.442695
    %v1257 = vpow.pop %v1256
    %v1258 = vadd.f32 %v1253, 1.0
    %v1259 = vadd.f32 %v1255, 1.0
    %v1260 = vadd.f32 %v1257, 1.0
    %v1261 = vrcp.pop %v1258
    %v1262 = vmul.f32 1.0, %v1261
    %v1263 = vrcp.pop %v1259
    %v1264 = vmul.f32 1.0, %v1263
    %v1265 = vrcp.pop %v1260
    %v1266 = vmul.f32 1.0, %v1265
    %v1267 = vtanh.pop %v1248
    %v1268 = vmul.f32 %v1264, %v1182
    %v1269 = vmul.f32 %v1262, %v1267
    %v1270 = vadd.f32 %v1268, %v1269
    %v1271 = vtanh.pop %v1270
    %v1272 = vmul.f32 %v1266, %v1271
    %v1273 = vlaneseq
    %v1274 = vshrl.u32 %v1273, 7
    %v1275 = vsub.s32 0, %v1274
    %v1276 = vrot.slane %v1272, %v1275
    %v1277 = vmul.f32 %v860, %v1276
    %v1278 = vmul.f32 %v865, %v1276
    %v1279 = vmul.f32 %v870, %v1276
    %v1280 = vmul.f32 %v875, %v1276
    %v1281 = vlaneseq
    %v1282 = vshrl.u32 %v1281, 7
    %v1283 = vsub.s32 1, %v1282
    %v1284 = vrot.slane %v1272, %v1283
    %v1285 = vmul.f32 %v883, %v1284
    %v1286 = vmul.f32 %v887, %v1284
    %v1287 = vmul.f32 %v891, %v1284
    %v1288 = vmul.f32 %v895, %v1284
    %v1289 = vadd.f32 %v1277, %v1285
    %v1290 = vadd.f32 %v1278, %v1286
    %v1291 = vadd.f32 %v1279, %v1287
    %v1292 = vadd.f32 %v1280, %v1288
    %v1293 = vlaneseq
    %v1294 = vshrl.u32 %v1293, 7
    %v1295 = vsub.s32 2, %v1294
    %v1296 = vrot.slane %v1272, %v1295
    %v1297 = vmul.f32 %v907, %v1296
    %v1298 = vmul.f32 %v911, %v1296
    %v1299 = vmul.f32 %v915, %v1296
    %v1300 = vmul.f32 %v919, %v1296
    %v1301 = vadd.f32 %v1289, %v1297
    %v1302 = vadd.f32 %v1290, %v1298
    %v1303 = vadd.f32 %v1291, %v1299
    %v1304 = vadd.f32 %v1292, %v1300
    %v1305 = vlaneseq
    %v1306 = vshrl.u32 %v1305, 7
    %v1307 = vsub.s32 3, %v1306
    %v1308 = vrot.slane %v1272, %v1307
    %v1309 = vmul.f32 %v931, %v1308
    %v1310 = vmul.f32 %v935, %v1308
    %v1311 = vmul.f32 %v939, %v1308
    %v1312 = vmul.f32 %v943, %v1308
    %v1313 = vadd.f32 %v1301, %v1309
    %v1314 = vadd.f32 %v1302, %v1310
    %v1315 = vadd.f32 %v1303, %v1311
    %v1316 = vadd.f32 %v1304, %v1312
    %v1317 = vlaneseq
    %v1318 = vshrl.u32 %v1317, 7
    %v1319 = vsub.s32 4, %v1318
    %v1320 = vrot.slane %v1272, %v1319
    %v1321 = vmul.f32 %v955, %v1320
    %v1322 = vmul.f32 %v959, %v1320
    %v1323 = vmul.f32 %v963, %v1320
    %v1324 = vmul.f32 %v967, %v1320
    %v1325 = vadd.f32 %v1313, %v1321
    %v1326 = vadd.f32 %v1314, %v1322
    %v1327 = vadd.f32 %v1315, %v1323
    %v1328 = vadd.f32 %v1316, %v1324
    %v1329 = vld [vmem:[%s833] sm:$0xff]
    %v1330 = vld [vmem:[%s833 + $0x8] sm:$0xff]
    %v1331 = vld [vmem:[%s833 + $0x10] sm:$0xff]
    %v1332 = vld [vmem:[%s833 + $0x18] sm:$0xff]
    %v1333 = vadd.f32 %v1329, %v1325
    %v1334 = vadd.f32 %v1330, %v1326
    %v1335 = vadd.f32 %v1331, %v1327
    %v1336 = vadd.f32 %v1332, %v1328
    %v1337 = vxor.u32 %v1333, 2147483648
    %v1338 = vxor.u32 %v1334, 2147483648
    %v1339 = vxor.u32 %v1335, 2147483648
    %v1340 = vmul.f32 %v1337, 1.442695
    %v1341 = vpow.pop %v1340
    %v1342 = vmul.f32 %v1338, 1.442695
    %v1343 = vpow.pop %v1342
    %v1344 = vmul.f32 %v1339, 1.442695
    %v1345 = vpow.pop %v1344
    %v1346 = vadd.f32 %v1341, 1.0
    %v1347 = vadd.f32 %v1343, 1.0
    %v1348 = vadd.f32 %v1345, 1.0
    %v1349 = vrcp.pop %v1346
    %v1350 = vmul.f32 1.0, %v1349
    %v1351 = vrcp.pop %v1347
    %v1352 = vmul.f32 1.0, %v1351
    %v1353 = vrcp.pop %v1348
    %v1354 = vmul.f32 1.0, %v1353
    %v1355 = vtanh.pop %v1336
    %v1356 = vmul.f32 %v1352, %v1270
    %v1357 = vmul.f32 %v1350, %v1355
    %v1358 = vadd.f32 %v1356, %v1357
    %v1359 = vtanh.pop %v1358
    %v1360 = vmul.f32 %v1354, %v1359
    %v1361 = vlaneseq
    %v1362 = vshrl.u32 %v1361, 7
    %v1363 = vsub.s32 0, %v1362
    %v1364 = vrot.slane %v1360, %v1363
    %v1365 = vmul.f32 %v860, %v1364
    %v1366 = vmul.f32 %v865, %v1364
    %v1367 = vmul.f32 %v870, %v1364
    %v1368 = vmul.f32 %v875, %v1364
    %v1369 = vlaneseq
    %v1370 = vshrl.u32 %v1369, 7
    %v1371 = vsub.s32 1, %v1370
    %v1372 = vrot.slane %v1360, %v1371
    %v1373 = vmul.f32 %v883, %v1372
    %v1374 = vmul.f32 %v887, %v1372
    %v1375 = vmul.f32 %v891, %v1372
    %v1376 = vmul.f32 %v895, %v1372
    %v1377 = vadd.f32 %v1365, %v1373
    %v1378 = vadd.f32 %v1366, %v1374
    %v1379 = vadd.f32 %v1367, %v1375
    %v1380 = vadd.f32 %v1368, %v1376
    %v1381 = vlaneseq
    %v1382 = vshrl.u32 %v1381, 7
    %v1383 = vsub.s32 2, %v1382
    %v1384 = vrot.slane %v1360, %v1383
    %v1385 = vmul.f32 %v907, %v1384
    %v1386 = vmul.f32 %v911, %v1384
    %v1387 = vmul.f32 %v915, %v1384
    %v1388 = vmul.f32 %v919, %v1384
    %v1389 = vadd.f32 %v1377, %v1385
    %v1390 = vadd.f32 %v1378, %v1386
    %v1391 = vadd.f32 %v1379, %v1387
    %v1392 = vadd.f32 %v1380, %v1388
    %v1393 = vlaneseq
    %v1394 = vshrl.u32 %v1393, 7
    %v1395 = vsub.s32 3, %v1394
    %v1396 = vrot.slane %v1360, %v1395
    %v1397 = vmul.f32 %v931, %v1396
    %v1398 = vmul.f32 %v935, %v1396
    %v1399 = vmul.f32 %v939, %v1396
    %v1400 = vmul.f32 %v943, %v1396
    %v1401 = vadd.f32 %v1389, %v1397
    %v1402 = vadd.f32 %v1390, %v1398
    %v1403 = vadd.f32 %v1391, %v1399
    %v1404 = vadd.f32 %v1392, %v1400
    %v1405 = vlaneseq
    %v1406 = vshrl.u32 %v1405, 7
    %v1407 = vsub.s32 4, %v1406
    %v1408 = vrot.slane %v1360, %v1407
    %v1409 = vmul.f32 %v955, %v1408
    %v1410 = vmul.f32 %v959, %v1408
    %v1411 = vmul.f32 %v963, %v1408
    %v1412 = vmul.f32 %v967, %v1408
    %v1413 = vadd.f32 %v1401, %v1409
    %v1414 = vadd.f32 %v1402, %v1410
    %v1415 = vadd.f32 %v1403, %v1411
    %v1416 = vadd.f32 %v1404, %v1412
    %v1417 = vld [vmem:[%s838] sm:$0xff]
    %v1418 = vld [vmem:[%s838 + $0x8] sm:$0xff]
    %v1419 = vld [vmem:[%s838 + $0x10] sm:$0xff]
    %v1420 = vld [vmem:[%s838 + $0x18] sm:$0xff]
    %v1421 = vadd.f32 %v1417, %v1413
    %v1422 = vadd.f32 %v1418, %v1414
    %v1423 = vadd.f32 %v1419, %v1415
    %v1424 = vadd.f32 %v1420, %v1416
    %v1425 = vxor.u32 %v1421, 2147483648
    %v1426 = vxor.u32 %v1422, 2147483648
    %v1427 = vxor.u32 %v1423, 2147483648
    %v1428 = vmul.f32 %v1425, 1.442695
    %v1429 = vpow.pop %v1428
    %v1430 = vmul.f32 %v1426, 1.442695
    %v1431 = vpow.pop %v1430
    %v1432 = vmul.f32 %v1427, 1.442695
    %v1433 = vpow.pop %v1432
    %v1434 = vadd.f32 %v1429, 1.0
    %v1435 = vadd.f32 %v1431, 1.0
    %v1436 = vadd.f32 %v1433, 1.0
    %v1437 = vrcp.pop %v1434
    %v1438 = vmul.f32 1.0, %v1437
    %v1439 = vrcp.pop %v1435
    %v1440 = vmul.f32 1.0, %v1439
    %v1441 = vrcp.pop %v1436
    %v1442 = vmul.f32 1.0, %v1441
    %v1443 = vtanh.pop %v1424
    %v1444 = vmul.f32 %v1440, %v1358
    %v1445 = vmul.f32 %v1438, %v1443
    %v1446 = vadd.f32 %v1444, %v1445
    %v1447 = vtanh.pop %v1446
    %v1448 = vmul.f32 %v1442, %v1447
    %v1449 = vlaneseq
    %v1450 = vshrl.u32 %v1449, 7
    %v1451 = vsub.s32 0, %v1450
    %v1452 = vrot.slane %v1448, %v1451
    %v1453 = vmul.f32 %v860, %v1452
    %v1454 = vmul.f32 %v865, %v1452
    %v1455 = vmul.f32 %v870, %v1452
    %v1456 = vmul.f32 %v875, %v1452
    %v1457 = vlaneseq
    %v1458 = vshrl.u32 %v1457, 7
    %v1459 = vsub.s32 1, %v1458
    %v1460 = vrot.slane %v1448, %v1459
    %v1461 = vmul.f32 %v883, %v1460
    %v1462 = vmul.f32 %v887, %v1460
    %v1463 = vmul.f32 %v891, %v1460
    %v1464 = vmul.f32 %v895, %v1460
    %v1465 = vadd.f32 %v1453, %v1461
    %v1466 = vadd.f32 %v1454, %v1462
    %v1467 = vadd.f32 %v1455, %v1463
    %v1468 = vadd.f32 %v1456, %v1464
    %v1469 = vlaneseq
    %v1470 = vshrl.u32 %v1469, 7
    %v1471 = vsub.s32 2, %v1470
    %v1472 = vrot.slane %v1448, %v1471
    %v1473 = vmul.f32 %v907, %v1472
    %v1474 = vmul.f32 %v911, %v1472
    %v1475 = vmul.f32 %v915, %v1472
    %v1476 = vmul.f32 %v919, %v1472
    %v1477 = vadd.f32 %v1465, %v1473
    %v1478 = vadd.f32 %v1466, %v1474
    %v1479 = vadd.f32 %v1467, %v1475
    %v1480 = vadd.f32 %v1468, %v1476
    %v1481 = vlaneseq
    %v1482 = vshrl.u32 %v1481, 7
    %v1483 = vsub.s32 3, %v1482
    %v1484 = vrot.slane %v1448, %v1483
    %v1485 = vmul.f32 %v931, %v1484
    %v1486 = vmul.f32 %v935, %v1484
    %v1487 = vmul.f32 %v939, %v1484
    %v1488 = vmul.f32 %v943, %v1484
    %v1489 = vadd.f32 %v1477, %v1485
    %v1490 = vadd.f32 %v1478, %v1486
    %v1491 = vadd.f32 %v1479, %v1487
    %v1492 = vadd.f32 %v1480, %v1488
    %v1493 = vlaneseq
    %v1494 = vshrl.u32 %v1493, 7
    %v1495 = vsub.s32 4, %v1494
    %v1496 = vrot.slane %v1448, %v1495
    %v1497 = vmul.f32 %v955, %v1496
    %v1498 = vmul.f32 %v959, %v1496
    %v1499 = vmul.f32 %v963, %v1496
    %v1500 = vmul.f32 %v967, %v1496
    %v1501 = vadd.f32 %v1489, %v1497
    %v1502 = vadd.f32 %v1490, %v1498
    %v1503 = vadd.f32 %v1491, %v1499
    %v1504 = vadd.f32 %v1492, %v1500
    %v1505 = vld [vmem:[%s843] sm:$0xff]
    %v1506 = vld [vmem:[%s843 + $0x8] sm:$0xff]
    %v1507 = vld [vmem:[%s843 + $0x10] sm:$0xff]
    %v1508 = vld [vmem:[%s843 + $0x18] sm:$0xff]
    %v1509 = vadd.f32 %v1505, %v1501
    %v1510 = vadd.f32 %v1506, %v1502
    %v1511 = vadd.f32 %v1507, %v1503
    %v1512 = vadd.f32 %v1508, %v1504
    %v1513 = vxor.u32 %v1509, 2147483648
    %v1514 = vxor.u32 %v1510, 2147483648
    %v1515 = vxor.u32 %v1511, 2147483648
    %v1516 = vmul.f32 %v1513, 1.442695
    %v1517 = vpow.pop %v1516
    %v1518 = vmul.f32 %v1514, 1.442695
    %v1519 = vpow.pop %v1518
    %v1520 = vmul.f32 %v1515, 1.442695
    %v1521 = vpow.pop %v1520
    %v1522 = vadd.f32 %v1517, 1.0
    %v1523 = vadd.f32 %v1519, 1.0
    %v1524 = vadd.f32 %v1521, 1.0
    %v1525 = vrcp.pop %v1522
    %v1526 = vmul.f32 1.0, %v1525
    %v1527 = vrcp.pop %v1523
    %v1528 = vmul.f32 1.0, %v1527
    %v1529 = vrcp.pop %v1524
    %v1530 = vmul.f32 1.0, %v1529
    %v1531 = vtanh.pop %v1512
    %v1532 = vmul.f32 %v1528, %v1446
    %v1533 = vmul.f32 %v1526, %v1531
    %v1534 = vadd.f32 %v1532, %v1533
    %v1535 = vtanh.pop %v1534
    %v1536 = vmul.f32 %v1530, %v1535
    %v1537 = vlaneseq
    %v1538 = vshrl.u32 %v1537, 7
    %v1539 = vsub.s32 0, %v1538
    %v1540 = vrot.slane %v1536, %v1539
    %v1541 = vmul.f32 %v860, %v1540
    %v1542 = vmul.f32 %v865, %v1540
    %v1543 = vmul.f32 %v870, %v1540
    %v1544 = vmul.f32 %v875, %v1540
    %v1545 = vlaneseq
    %v1546 = vshrl.u32 %v1545, 7
    %v1547 = vsub.s32 1, %v1546
    %v1548 = vrot.slane %v1536, %v1547
    %v1549 = vmul.f32 %v883, %v1548
    %v1550 = vmul.f32 %v887, %v1548
    %v1551 = vmul.f32 %v891, %v1548
    %v1552 = vmul.f32 %v895, %v1548
    %v1553 = vadd.f32 %v1541, %v1549
    %v1554 = vadd.f32 %v1542, %v1550
    %v1555 = vadd.f32 %v1543, %v1551
    %v1556 = vadd.f32 %v1544, %v1552
    %v1557 = vlaneseq
    %v1558 = vshrl.u32 %v1557, 7
    %v1559 = vsub.s32 2, %v1558
    %v1560 = vrot.slane %v1536, %v1559
    %v1561 = vmul.f32 %v907, %v1560
    %v1562 = vmul.f32 %v911, %v1560
    %v1563 = vmul.f32 %v915, %v1560
    %v1564 = vmul.f32 %v919, %v1560
    %v1565 = vadd.f32 %v1553, %v1561
    %v1566 = vadd.f32 %v1554, %v1562
    %v1567 = vadd.f32 %v1555, %v1563
    %v1568 = vadd.f32 %v1556, %v1564
    %v1569 = vlaneseq
    %v1570 = vshrl.u32 %v1569, 7
    %v1571 = vsub.s32 3, %v1570
    %v1572 = vrot.slane %v1536, %v1571
    %v1573 = vmul.f32 %v931, %v1572
    %v1574 = vmul.f32 %v935, %v1572
    %v1575 = vmul.f32 %v939, %v1572
    %v1576 = vmul.f32 %v943, %v1572
    %v1577 = vadd.f32 %v1565, %v1573
    %v1578 = vadd.f32 %v1566, %v1574
    %v1579 = vadd.f32 %v1567, %v1575
    %v1580 = vadd.f32 %v1568, %v1576
    %v1581 = vlaneseq
    %v1582 = vshrl.u32 %v1581, 7
    %v1583 = vsub.s32 4, %v1582
    %v1584 = vrot.slane %v1536, %v1583
    %v1585 = vmul.f32 %v955, %v1584
    %v1586 = vmul.f32 %v959, %v1584
    %v1587 = vmul.f32 %v963, %v1584
    %v1588 = vmul.f32 %v967, %v1584
    %v1589 = vadd.f32 %v1577, %v1585
    %v1590 = vadd.f32 %v1578, %v1586
    %v1591 = vadd.f32 %v1579, %v1587
    %v1592 = vadd.f32 %v1580, %v1588
    %v1593 = vld [vmem:[%s848] sm:$0xff]
    %v1594 = vld [vmem:[%s848 + $0x8] sm:$0xff]
    %v1595 = vld [vmem:[%s848 + $0x10] sm:$0xff]
    %v1596 = vld [vmem:[%s848 + $0x18] sm:$0xff]
    %v1597 = vadd.f32 %v1593, %v1589
    %v1598 = vadd.f32 %v1594, %v1590
    %v1599 = vadd.f32 %v1595, %v1591
    %v1600 = vadd.f32 %v1596, %v1592
    %v1601 = vxor.u32 %v1597, 2147483648
    %v1602 = vxor.u32 %v1598, 2147483648
    %v1603 = vxor.u32 %v1599, 2147483648
    %v1604 = vmul.f32 %v1601, 1.442695
    %v1605 = vpow.pop %v1604
    %v1606 = vmul.f32 %v1602, 1.442695
    %v1607 = vpow.pop %v1606
    %v1608 = vmul.f32 %v1603, 1.442695
    %v1609 = vpow.pop %v1608
    %v1610 = vadd.f32 %v1605, 1.0
    %v1611 = vadd.f32 %v1607, 1.0
    %v1612 = vadd.f32 %v1609, 1.0
    %v1613 = vrcp.pop %v1610
    %v1614 = vmul.f32 1.0, %v1613
    %v1615 = vrcp.pop %v1611
    %v1616 = vmul.f32 1.0, %v1615
    %v1617 = vrcp.pop %v1612
    %v1618 = vmul.f32 1.0, %v1617
    %v1619 = vtanh.pop %v1600
    %v1620 = vmul.f32 %v1616, %v1534
    %v1621 = vmul.f32 %v1614, %v1619
    %v1622 = vadd.f32 %v1620, %v1621
    %v1623 = vtanh.pop %v1622
    %v1624 = vmul.f32 %v1618, %v1623
    %s1625 = sld [smem:[#allocation3]]
    %v1626 = vstv %s1625
    %v1627 = vmul.f32 %v1626, %v1624
    %s1628 = sld [smem:[#allocation3 + $0x1]]
    %v1629 = vstv %s1628
    %v1630 = vmul.f32 %v1629, %v1624
    %v1632 = vrot.slane %v1630, 1
    %v1634 = vadd.f32 %v1627, %v1632
    %s1635 = sld [smem:[#allocation3 + $0x2]]
    %v1636 = vstv %s1635
    %v1637 = vmul.f32 %v1636, %v1624
    %v1639 = vrot.slane %v1637, 2
    %v1641 = vadd.f32 %v1634, %v1639
    %s1642 = sld [smem:[#allocation3 + $0x3]]
    %v1643 = vstv %s1642
    %v1644 = vmul.f32 %v1643, %v1624
    %v1646 = vrot.slane %v1644, 3
    %v1648 = vadd.f32 %v1641, %v1646
    %s1649 = sld [smem:[#allocation3 + $0x4]]
    %v1650 = vstv %s1649
    %v1651 = vmul.f32 %v1650, %v1624
    %v1653 = vrot.slane %v1651, 4
    %v1655 = vadd.f32 %v1648, %v1653
    %s1656 = sld [smem:[#allocation3 + $0x5]]
    %v1657 = vstv %s1656
    %v1658 = vadd.f32 %v1655, %v1657
    %v1659 = vtanh.pop %v1658
    %s1660 = sld [smem:[#allocation3 + $0x6]]
    %v1661 = vld [vmem:[%s1] sm:$0x1]
    %v1662 = vstv %s1660
    %v1663 = vmul.f32 %v1662, %v1661
    %s1664 = sld [smem:[#allocation3 + $0x7]]
    %v1665 = vstv %s1664
    %v1666 = vadd.f32 %v1663, %v1665
    %v1667 = vtanh.pop %v1666
    %s1668 = sld [smem:[#allocation3 + $0x8]]
    %v1669 = vstv %s1668
    %v1670 = vmul.f32 %v1669, %v1667
    %s1671 = sld [smem:[#allocation3 + $0x9]]
    %v1672 = vstv %s1671
    %v1673 = vmul.f32 %v1672, %v1659
    %v1674 = vadd.f32 %v1670, %v1673
    %s1675 = sld [smem:[#allocation3 + $0xa]]
    %v1676 = vstv %s1675
    %v1677 = vadd.f32 %v1674, %v1676
    %v1678 = vxor.u32 %v1677, 2147483648
    %v1679 = vmul.f32 %v1678, 1.442695
    %v1680 = vpow.pop %v1679
    %v1681 = vadd.f32 %v1680, 1.0
    %v1682 = vrcp.pop %v1681
    %v1683 = vmul.f32 1.0, %v1682
    %1684 = vst [vmem:[#allocation6] sm:$0x1] %v1683
    // Predicated region
    $region38: #{tpu_custom_call.1} parent=1 // pred_check
      _
    $region39: #{tpu_custom_call.1} parent=1 // pred_check_branch
      %1686 = sbr.rel (0) target = $region41
    $region40: #{tpu_custom_call.1} parent=1 // pred_region
      %s1688 = ssub.s32 16, 16
      %1689 = vsyncadd [#allocation4], %s1688
      %s1691 = sshll.u32 [#allocation6], 4
      %s1692 = int_to_ptr.vmem [resolvable:$true] %s1691
      %1694 = dma.vmem_to_hbm [thread:$0]  %s1692, 16, %s8, [#allocation4]
    $region41: #{tpu_custom_call.1} parent=1 // pred_fallthru
      _
    // Predicated region
    $region42: #{tpu_custom_call.1} parent=1 // pred_check
      _
    $region43: #{tpu_custom_call.1} parent=1 // pred_check_branch
      %1696 = sbr.rel (0) target = $region45
    $region44: #{tpu_custom_call.1} parent=1 // pred_region
      %1697 = dma.done [#allocation4], 16
    $region45: #{tpu_custom_call.1} parent=1 // pred_fallthru
      _
    %1698 = vsyncpa [#allocation4], 1
    %1699 = vsyncpa [#allocation5], 1

</llo_original>
